<compile_context>
chip_gen: v7x
topology: tpu7x:2x2x1
jax: 0.10.0
libtpu: 0.0.40
codegen_flags: <defaults>
</compile_context>

<pallas_src>
import functools

import jax
import jax.numpy as jnp
import numpy as np
from jax.experimental import pallas as pl
from jax.experimental.pallas import tpu as pltpu

_NEG_INF = -1e30  # large finite negative: exp underflows to 0, never NaN


# ----------------------------------------------------------------------------
# Pallas kernel
# ----------------------------------------------------------------------------
def _bert4rec_kernel(
    seq_ref,      # (Bt, L, D)  f32
    len_ref,      # (Bt, 1)     i32
    pos_ref,      # (P, D)      f32   P = max_his + 1
    wqkv_ref,     # (NL, D, 3D) f32   fused [Wq | Wk | Wv]
    bqkv_ref,     # (NL, 1, 3D) f32
    ln1g_ref, ln1b_ref,     # (NL, 1, D)
    w1_ref, b1_ref,         # (NL, D, F), (NL, 1, F)
    w2_ref, b2_ref,         # (NL, F, D), (NL, 1, D)
    ln2g_ref, ln2b_ref,     # (NL, 1, D)
    out_ref,      # (Bt, D)     f32
    *,
    num_layers: int,
    num_heads: int,
):
    Bt, L, D = seq_ref.shape
    H = num_heads
    dk = D // H
    inv_sqrt_dk = 1.0 / (dk ** 0.5)

    lengths = len_ref[...]                                        # (Bt, 1) i32
    len_range = jax.lax.broadcasted_iota(jnp.int32, (Bt, L), 1)   # (Bt, L)
    valid = len_range < lengths                                   # (Bt, L) bool
    valid_f = valid.astype(jnp.float32)                           # (Bt, L)

    # Positional embedding: position[b, l] = l if valid else 0, so the lookup
    # is a select between table row l and table row 0 (no one-hot matmul).
    pos_tab = pos_ref[...]                                        # (P, D)
    pos_l = jnp.broadcast_to(pos_tab[0:L][None, :, :], (Bt, L, D))
    pos_0 = jnp.broadcast_to(pos_tab[0:1][None, :, :], (Bt, L, D))
    pos_vec = pos_0 + valid_f[:, :, None] * (pos_l - pos_0)       # (Bt, L, D)

    x = (seq_ref[...] + pos_vec).reshape(Bt * L, D)               # token-major

    # Additive key mask for the folded (H*Bt, L, L) score tensor, built once.
    # Folded batch index = h*Bt + b (head-major), matching heads()/merge below.
    mask_bias = jnp.where(valid[:, None, :], 0.0, _NEG_INF)       # (Bt, 1, L)
    mask_bias = jnp.concatenate([mask_bias] * H, axis=0)          # (H*Bt, 1, L)

    def layer_norm(t, g, b):
        mu = jnp.mean(t, axis=-1, keepdims=True)
        var = jnp.mean((t - mu) ** 2, axis=-1, keepdims=True)
        return (t - mu) * jax.lax.rsqrt(var + 1e-5) * g + b

    for l in range(num_layers):
        # ---- fused Q/K/V projection: one (Bt*L, D) x (D, 3D) matmul ---------
        qkv = jnp.dot(x, wqkv_ref[l],
                      preferred_element_type=jnp.float32) + bqkv_ref[l]

        # head split: (Bt*L, 3D) -> (H*Bt, L, dk), head-major along axis 0
        def heads(base):
            return jnp.concatenate(
                [qkv[:, base + h * dk: base + (h + 1) * dk].reshape(Bt, L, dk)
                 for h in range(H)],
                axis=0)

        qh, kh, vh = heads(0), heads(D), heads(2 * D)

        # ---- all heads in one batched score / context einsum pair -----------
        s = jnp.einsum("bqd,bkd->bqk", qh, kh,
                       preferred_element_type=jnp.float32) * inv_sqrt_dk
        s = s + mask_bias                                        # masked_fill
        # ReChorus subtracts the GLOBAL max before softmax; softmax is shift
        # invariant, so one max over the whole (H*Bt, L, L) block is exact.
        e = jnp.exp(s - jnp.max(s))
        denom = jnp.sum(e, axis=-1, keepdims=True)
        p = e / jnp.where(denom == 0.0, 1.0, denom)   # torch nan_to_num(0)
        ctx_h = jnp.einsum("bqk,bkd->bqd", p, vh,
                           preferred_element_type=jnp.float32)   # (H*Bt, L, dk)

        # head merge: back to token-major (Bt*L, D), head h -> cols h*dk:(h+1)*dk
        ctx = jnp.concatenate(
            [ctx_h[h * Bt:(h + 1) * Bt].reshape(Bt * L, dk) for h in range(H)],
            axis=-1)

        # ---- residual + LN1, FFN, residual + LN2 ----------------------------
        h1 = layer_norm(ctx + x, ln1g_ref[l], ln1b_ref[l])
        ff = jnp.maximum(
            jnp.dot(h1, w1_ref[l], preferred_element_type=jnp.float32)
            + b1_ref[l], 0.0)
        ff = jnp.dot(ff, w2_ref[l],
                     preferred_element_type=jnp.float32) + b2_ref[l]
        x = layer_norm(ff + h1, ln2g_ref[l], ln2b_ref[l])

    # zero padded positions, then pick the vector at index (length - 1)
    x3 = x.reshape(Bt, L, D) * valid_f[:, :, None]
    gather = (len_range == (lengths - 1)).astype(jnp.float32)     # (Bt, L)
    out_ref[...] = jnp.sum(x3 * gather[:, :, None], axis=1)       # (Bt, D)


# ----------------------------------------------------------------------------
# Wrapper
# ----------------------------------------------------------------------------
def bert4rec_encoder(seq, lengths, params, *, num_layers, num_heads,
                     batch_tile=None):
    B, L, D = seq.shape
    P = params["pos_emb"].shape[0]
    F = params["w1"].shape[-1]
    NL = num_layers
    assert L <= P, "sequence length exceeds positional table"
    assert D % num_heads == 0

    # Batch tile: whole batch when small; otherwise a multiple of 8 dividing B
    # (keeps every block shape legal and every grid step full).
    if batch_tile is None:
        batch_tile = B if (B <= 8 or B % 8 != 0) else 8
    assert B % batch_tile == 0, "batch_tile must divide the batch size"
    nb = B // batch_tile

    lengths2d = lengths.reshape(B, 1).astype(jnp.int32)
    # Fused QKV weights / biases: one matmul per layer instead of three.
    wqkv = jnp.concatenate([params["wq"], params["wk"], params["wv"]], axis=-1)
    bqkv = jnp.concatenate([params["bq"], params["bk"], params["bv"]], axis=-1)

    def resident3(shape):   # weights: same block every grid step
        return pl.BlockSpec(shape, lambda b: (0, 0, 0))

    in_specs = [
        pl.BlockSpec((batch_tile, L, D), lambda b: (b, 0, 0)),    # seq
        pl.BlockSpec((batch_tile, 1),    lambda b: (b, 0)),       # lengths
        pl.BlockSpec((P, D),             lambda b: (0, 0)),       # pos table
        resident3((NL, D, 3 * D)),                                # wqkv
        resident3((NL, 1, 3 * D)),                                # bqkv
        resident3((NL, 1, D)), resident3((NL, 1, D)),             # ln1 g / b
        resident3((NL, D, F)), resident3((NL, 1, F)),             # w1 / b1
        resident3((NL, F, D)), resident3((NL, 1, D)),             # w2 / b2
        resident3((NL, 1, D)), resident3((NL, 1, D)),             # ln2 g / b
    ]
    out_specs = pl.BlockSpec((batch_tile, D), lambda b: (b, 0))

    kernel = functools.partial(_bert4rec_kernel,
                               num_layers=num_layers, num_heads=num_heads)

    return pl.pallas_call(
        kernel,
        out_shape=jax.ShapeDtypeStruct((B, D), jnp.float32),
        grid=(nb,),
        in_specs=in_specs,
        out_specs=out_specs,
        compiler_params=pltpu.CompilerParams(
            dimension_semantics=("parallel",)),
    )(seq.astype(jnp.float32), lengths2d, params["pos_emb"],
      wqkv, bqkv,
      params["ln1_g"], params["ln1_b"],
      params["w1"], params["b1"],
      params["w2"], params["b2"],
      params["ln2_g"], params["ln2_b"])


# ----------------------------------------------------------------------------
# Deterministic parameter construction (shapes from BERT4RecEncoder.__init__)
# ----------------------------------------------------------------------------
def init_params(emb_size, max_his, num_layers, seed=0):
    d_ff = emb_size
    P = max_his + 1
    key = jax.random.PRNGKey(seed)
    ks = jax.random.split(key, 16)

    def nrm(k, shape, scale=0.1):
        return (scale * jax.random.normal(k, shape)).astype(jnp.float32)

    return dict(
        pos_emb=nrm(ks[0], (P, emb_size)),
        wq=nrm(ks[1], (num_layers, emb_size, emb_size)),
        wk=nrm(ks[2], (num_layers, emb_size, emb_size)),
        wv=nrm(ks[3], (num_layers, emb_size, emb_size)),
        bq=nrm(ks[4], (num_layers, 1, emb_size), 0.02),
        bk=nrm(ks[5], (num_layers, 1, emb_size), 0.02),
        bv=nrm(ks[6], (num_layers, 1, emb_size), 0.02),
        ln1_g=(1.0 + nrm(ks[7], (num_layers, 1, emb_size), 0.02)),
        ln1_b=nrm(ks[8], (num_layers, 1, emb_size), 0.02),
        w1=nrm(ks[9], (num_layers, emb_size, d_ff)),
        b1=nrm(ks[10], (num_layers, 1, d_ff), 0.02),
        w2=nrm(ks[11], (num_layers, d_ff, emb_size)),
        b2=nrm(ks[12], (num_layers, 1, emb_size), 0.02),
        ln2_g=(1.0 + nrm(ks[13], (num_layers, 1, emb_size), 0.02)),
        ln2_b=nrm(ks[14], (num_layers, 1, emb_size), 0.02),
    )


# ----------------------------------------------------------------------------
# Pure-JAX reference (mirrors the PyTorch code path) for verification
# ----------------------------------------------------------------------------
def reference_forward(seq, lengths, params, *, num_layers, num_heads):
    B, L, D = seq.shape
    dk = D // num_heads
    len_range = jnp.arange(L)
    valid = len_range[None, :] < lengths[:, None]
    position = len_range[None, :] * valid.astype(jnp.int32)
    x = seq + params["pos_emb"][position]
    attn_mask = valid[:, None, None, :]

    def ln(t, g, b):
        mu = t.mean(-1, keepdims=True)
        var = ((t - mu) ** 2).mean(-1, keepdims=True)
        return (t - mu) / jnp.sqrt(var + 1e-5) * g + b

    for l in range(num_layers):
        q = x @ params["wq"][l] + params["bq"][l][0]
        k = x @ params["wk"][l] + params["bk"][l][0]
        v = x @ params["wv"][l] + params["bv"][l][0]

        def split(t):
            return t.reshape(B, L, num_heads, dk).transpose(0, 2, 1, 3)

        qh, kh, vh = split(q), split(k), split(v)
        s = jnp.einsum("bhqd,bhkd->bhqk", qh, kh) / (dk ** 0.5)
        s = jnp.where(attn_mask, s, -jnp.inf)
        s = jax.nn.softmax(s - s.max(), axis=-1)
        s = jnp.nan_to_num(s)
        ctx = jnp.einsum("bhqk,bhkd->bhqd", s, vh).transpose(0, 2, 1, 3)
        ctx = ctx.reshape(B, L, D)

        h1 = ln(ctx + x, params["ln1_g"][l][0], params["ln1_b"][l][0])
        ff = jax.nn.relu(h1 @ params["w1"][l] + params["b1"][l][0])
        ff = ff @ params["w2"][l] + params["b2"][l][0]
        x = ln(ff + h1, params["ln2_g"][l][0], params["ln2_b"][l][0])

    x = x * valid[:, :, None].astype(jnp.float32)
    return x[jnp.arange(B), lengths - 1]


# ----------------------------------------------------------------------------
if __name__ == "__main__":
    # small shapes implied by the module: batch=2, seq_len=8, emb_size=32
    B, L, D = 2, 8, 32
    MAX_HIS = 16
    NUM_LAYERS = 2
    NUM_HEADS = 2

    key = jax.random.PRNGKey(0)
    k_seq, _ = jax.random.split(key)
    seq = jax.random.normal(k_seq, (B, L, D), dtype=jnp.float32)
    lengths = jnp.array([5, 8], dtype=jnp.int32)   # 1 <= length <= L

    params = init_params(D, MAX_HIS, NUM_LAYERS, seed=0)

    out = bert4rec_encoder(seq, lengths, params,
                           num_layers=NUM_LAYERS, num_heads=NUM_HEADS)
    out = jax.block_until_ready(out)

    ref = jax.block_until_ready(
        reference_forward(seq, lengths, params,
                          num_layers=NUM_LAYERS, num_heads=NUM_HEADS))

    np.testing.assert_allclose(np.asarray(out), np.asarray(ref),
                               rtol=1e-2, atol=1e-2)
    print("KERNEL_OK")
</pallas_src>

<mosaic_0001>
module attributes {stable_mosaic.version = 11 : i64} {
  func.func @_bert4rec_kernel(%arg0: i32, %arg1: memref<2x8x32xf32, #tpu.memory_space<vmem>>, %arg2: memref<2x1xi32, #tpu.memory_space<vmem>>, %arg3: memref<17x32xf32, #tpu.memory_space<vmem>>, %arg4: memref<2x32x96xf32, #tpu.memory_space<vmem>>, %arg5: memref<2x1x96xf32, #tpu.memory_space<vmem>>, %arg6: memref<2x1x32xf32, #tpu.memory_space<vmem>>, %arg7: memref<2x1x32xf32, #tpu.memory_space<vmem>>, %arg8: memref<2x32x32xf32, #tpu.memory_space<vmem>>, %arg9: memref<2x1x32xf32, #tpu.memory_space<vmem>>, %arg10: memref<2x32x32xf32, #tpu.memory_space<vmem>>, %arg11: memref<2x1x32xf32, #tpu.memory_space<vmem>>, %arg12: memref<2x1x32xf32, #tpu.memory_space<vmem>>, %arg13: memref<2x1x32xf32, #tpu.memory_space<vmem>>, %arg14: memref<2x32xf32, #tpu.memory_space<vmem>>) attributes {dimension_semantics = [#tpu.dimension_semantics<parallel>], iteration_bounds = array<i64: 1>, scalar_prefetch = 0 : i64, scratch_operands = 0 : i64, tpu.core_type = #tpu.core_type<tc>, window_params = [{transform_indices = @transform_0, window_bounds = array<i64: 2, 8, 32>}, {transform_indices = @transform_1, window_bounds = array<i64: 2, 1>}, {pipeline_mode = #tpu.pipeline_mode<synchronous>, transform_indices = @transform_2, window_bounds = array<i64: 17, 32>}, {pipeline_mode = #tpu.pipeline_mode<synchronous>, transform_indices = @transform_3, window_bounds = array<i64: 2, 32, 96>}, {pipeline_mode = #tpu.pipeline_mode<synchronous>, transform_indices = @transform_4, window_bounds = array<i64: 2, 1, 96>}, {pipeline_mode = #tpu.pipeline_mode<synchronous>, transform_indices = @transform_5, window_bounds = array<i64: 2, 1, 32>}, {pipeline_mode = #tpu.pipeline_mode<synchronous>, transform_indices = @transform_6, window_bounds = array<i64: 2, 1, 32>}, {pipeline_mode = #tpu.pipeline_mode<synchronous>, transform_indices = @transform_7, window_bounds = array<i64: 2, 32, 32>}, {pipeline_mode = #tpu.pipeline_mode<synchronous>, transform_indices = @transform_8, window_bounds = array<i64: 2, 1, 32>}, {pipeline_mode = #tpu.pipeline_mode<synchronous>, transform_indices = @transform_9, window_bounds = array<i64: 2, 32, 32>}, {pipeline_mode = #tpu.pipeline_mode<synchronous>, transform_indices = @transform_10, window_bounds = array<i64: 2, 1, 32>}, {pipeline_mode = #tpu.pipeline_mode<synchronous>, transform_indices = @transform_11, window_bounds = array<i64: 2, 1, 32>}, {pipeline_mode = #tpu.pipeline_mode<synchronous>, transform_indices = @transform_12, window_bounds = array<i64: 2, 1, 32>}, {transform_indices = @transform_13, window_bounds = array<i64: 2, 32>}]} {
    %c0 = arith.constant 0 : index
    %c0_0 = arith.constant 0 : index
    %0 = vector.load %arg2[%c0, %c0_0] : memref<2x1xi32, #tpu.memory_space<vmem>>, vector<2x1xi32>
    %1 = tpu.iota {dimensions = array<i32: 1>} : vector<2x8xi32>
    %2 = vector.broadcast %0 : vector<2x1xi32> to vector<2x8xi32>
    %3 = arith.cmpi slt, %1, %2 : vector<2x8xi32>
    %4 = arith.extui %3 : vector<2x8xi1> to vector<2x8xi32>
    %5 = arith.sitofp %4 : vector<2x8xi32> to vector<2x8xf32>
    %c0_1 = arith.constant 0 : index
    %c0_2 = arith.constant 0 : index
    %6 = vector.load %arg3[%c0_1, %c0_2] : memref<17x32xf32, #tpu.memory_space<vmem>>, vector<17x32xf32>
    %7 = vector.extract_strided_slice %6 {offsets = [0, 0], sizes = [8, 32], strides = [1, 1]} : vector<17x32xf32> to vector<8x32xf32>
    %8 = vector.shape_cast %7 : vector<8x32xf32> to vector<1x8x32xf32>
    %9 = vector.shape_cast %8 : vector<1x8x32xf32> to vector<1x8x32xf32>
    %10 = vector.broadcast %9 : vector<1x8x32xf32> to vector<2x8x32xf32>
    %11 = vector.extract_strided_slice %6 {offsets = [0, 0], sizes = [1, 32], strides = [1, 1]} : vector<17x32xf32> to vector<1x32xf32>
    %12 = vector.shape_cast %11 : vector<1x32xf32> to vector<1x1x32xf32>
    %13 = vector.shape_cast %12 : vector<1x1x32xf32> to vector<1x1x32xf32>
    %14 = vector.broadcast %13 : vector<1x1x32xf32> to vector<2x8x32xf32>
    %15 = vector.shape_cast %5 : vector<2x8xf32> to vector<2x8x1xf32>
    %16 = arith.subf %10, %14 : vector<2x8x32xf32>
    %17 = vector.broadcast %15 : vector<2x8x1xf32> to vector<2x8x32xf32>
    %18 = arith.mulf %17, %16 : vector<2x8x32xf32>
    %19 = arith.addf %14, %18 : vector<2x8x32xf32>
    %c0_3 = arith.constant 0 : index
    %c0_4 = arith.constant 0 : index
    %c0_5 = arith.constant 0 : index
    %20 = vector.load %arg1[%c0_3, %c0_4, %c0_5] : memref<2x8x32xf32, #tpu.memory_space<vmem>>, vector<2x8x32xf32>
    %21 = arith.addf %20, %19 : vector<2x8x32xf32>
    %22 = vector.shape_cast %21 : vector<2x8x32xf32> to vector<16x32xf32>
    %23 = vector.shape_cast %3 : vector<2x8xi1> to vector<2x1x8xi1>
    %cst = arith.constant 0.000000e+00 : f32
    %cst_6 = arith.constant -1.000000e+30 : f32
    %24 = vector.broadcast %cst : f32 to vector<2x1x8xf32>
    %25 = vector.broadcast %cst_6 : f32 to vector<2x1x8xf32>
    %26 = arith.select %23, %24, %25 : vector<2x1x8xi1>, vector<2x1x8xf32>
    %27 = tpu.concatenate %26, %26 in 0 : vector<2x1x8xf32>, vector<2x1x8xf32> -> vector<4x1x8xf32>
    %c0_7 = arith.constant 0 : index
    %c0_8 = arith.constant 0 : index
    %c0_9 = arith.constant 0 : index
    %28 = vector.load %arg4[%c0_7, %c0_8, %c0_9] : memref<2x32x96xf32, #tpu.memory_space<vmem>>, vector<1x32x96xf32>
    %29 = vector.shape_cast %28 : vector<1x32x96xf32> to vector<32x96xf32>
    %cst_10 = arith.constant dense<0.000000e+00> : vector<16x96xf32>
    %30 = tpu.matmul %22, %29, %cst_10 {dimension_numbers = #tpu.dot_dimension_numbers<[1], [0], [0], [1], [0, 0, 1, 1], [], []>} : vector<16x32xf32>, vector<32x96xf32>, vector<16x96xf32> -> vector<16x96xf32>
    %c0_11 = arith.constant 0 : index
    %c0_12 = arith.constant 0 : index
    %c0_13 = arith.constant 0 : index
    %31 = vector.load %arg5[%c0_11, %c0_12, %c0_13] : memref<2x1x96xf32, #tpu.memory_space<vmem>>, vector<1x1x96xf32>
    %32 = vector.shape_cast %31 : vector<1x1x96xf32> to vector<1x96xf32>
    %33 = vector.broadcast %32 : vector<1x96xf32> to vector<16x96xf32>
    %34 = arith.addf %30, %33 : vector<16x96xf32>
    %35 = vector.extract_strided_slice %34 {offsets = [0, 0], sizes = [16, 16], strides = [1, 1]} : vector<16x96xf32> to vector<16x16xf32>
    %36 = vector.shape_cast %35 : vector<16x16xf32> to vector<2x8x16xf32>
    %37 = vector.extract_strided_slice %34 {offsets = [0, 16], sizes = [16, 16], strides = [1, 1]} : vector<16x96xf32> to vector<16x16xf32>
    %38 = vector.shape_cast %37 : vector<16x16xf32> to vector<2x8x16xf32>
    %39 = tpu.concatenate %36, %38 in 0 : vector<2x8x16xf32>, vector<2x8x16xf32> -> vector<4x8x16xf32>
    %40 = vector.extract_strided_slice %34 {offsets = [0, 32], sizes = [16, 16], strides = [1, 1]} : vector<16x96xf32> to vector<16x16xf32>
    %41 = vector.shape_cast %40 : vector<16x16xf32> to vector<2x8x16xf32>
    %42 = vector.extract_strided_slice %34 {offsets = [0, 48], sizes = [16, 16], strides = [1, 1]} : vector<16x96xf32> to vector<16x16xf32>
    %43 = vector.shape_cast %42 : vector<16x16xf32> to vector<2x8x16xf32>
    %44 = tpu.concatenate %41, %43 in 0 : vector<2x8x16xf32>, vector<2x8x16xf32> -> vector<4x8x16xf32>
    %45 = vector.extract_strided_slice %34 {offsets = [0, 64], sizes = [16, 16], strides = [1, 1]} : vector<16x96xf32> to vector<16x16xf32>
    %46 = vector.shape_cast %45 : vector<16x16xf32> to vector<2x8x16xf32>
    %47 = vector.extract_strided_slice %34 {offsets = [0, 80], sizes = [16, 16], strides = [1, 1]} : vector<16x96xf32> to vector<16x16xf32>
    %48 = vector.shape_cast %47 : vector<16x16xf32> to vector<2x8x16xf32>
    %49 = tpu.concatenate %46, %48 in 0 : vector<2x8x16xf32>, vector<2x8x16xf32> -> vector<4x8x16xf32>
    "tpu.trace_start"() <{level = 10 : i32, message = "bqd,bkd->bqk"}> : () -> ()
    %cst_14 = arith.constant dense<0.000000e+00> : vector<4x8x8xf32>
    %50 = tpu.matmul %39, %44, %cst_14 {dimension_numbers = #tpu.dot_dimension_numbers<[2], [2], [1], [1], [0, 0, 0, 1, 1, 1], [0], [0]>} : vector<4x8x16xf32>, vector<4x8x16xf32>, vector<4x8x8xf32> -> vector<4x8x8xf32>
    "tpu.trace_stop"() : () -> ()
    %cst_15 = arith.constant 2.500000e-01 : f32
    %51 = vector.broadcast %cst_15 : f32 to vector<4x8x8xf32>
    %52 = arith.mulf %50, %51 : vector<4x8x8xf32>
    %53 = vector.broadcast %27 : vector<4x1x8xf32> to vector<4x8x8xf32>
    %54 = arith.addf %52, %53 : vector<4x8x8xf32>
    %55 = vector.shape_cast %54 : vector<4x8x8xf32> to vector<1x4x8x8xf32>
    %cst_16 = arith.constant dense<0xFF800000> : vector<1xf32>
    %56 = vector.multi_reduction <maximumf>, %55, %cst_16 [1, 2, 3] : vector<1x4x8x8xf32> to vector<1xf32>
    %57 = vector.shape_cast %56 : vector<1xf32> to vector<1x1x1x1xf32>
    %58 = vector.extract %57[0, 0, 0, 0] : f32 from vector<1x1x1x1xf32>
    %59 = vector.broadcast %58 : f32 to vector<4x8x8xf32>
    %60 = arith.subf %54, %59 : vector<4x8x8xf32>
    %61 = math.exp %60 : vector<4x8x8xf32>
    %cst_17 = arith.constant dense<0.000000e+00> : vector<4x8xf32>
    %62 = vector.multi_reduction <add>, %61, %cst_17 [2] : vector<4x8x8xf32> to vector<4x8xf32>
    %63 = vector.shape_cast %62 : vector<4x8xf32> to vector<4x8x1xf32>
    %cst_18 = arith.constant 0.000000e+00 : f32
    %64 = vector.broadcast %cst_18 : f32 to vector<4x8x1xf32>
    %65 = arith.cmpf oeq, %63, %64 : vector<4x8x1xf32>
    %cst_19 = arith.constant 1.000000e+00 : f32
    %66 = vector.broadcast %cst_19 : f32 to vector<4x8x1xf32>
    %67 = arith.select %65, %66, %63 : vector<4x8x1xi1>, vector<4x8x1xf32>
    %68 = vector.broadcast %67 : vector<4x8x1xf32> to vector<4x8x8xf32>
    %69 = arith.divf %61, %68 : vector<4x8x8xf32>
    "tpu.trace_start"() <{level = 10 : i32, message = "bqk,bkd->bqd"}> : () -> ()
    %cst_20 = arith.constant dense<0.000000e+00> : vector<4x8x16xf32>
    %70 = tpu.matmul %69, %49, %cst_20 {dimension_numbers = #tpu.dot_dimension_numbers<[2], [1], [1], [2], [0, 0, 0, 1, 1, 2], [0], [0]>} : vector<4x8x8xf32>, vector<4x8x16xf32>, vector<4x8x16xf32> -> vector<4x8x16xf32>
    "tpu.trace_stop"() : () -> ()
    %71 = vector.extract_strided_slice %70 {offsets = [0, 0, 0], sizes = [2, 8, 16], strides = [1, 1, 1]} : vector<4x8x16xf32> to vector<2x8x16xf32>
    %72 = vector.shape_cast %71 : vector<2x8x16xf32> to vector<16x16xf32>
    %73 = vector.extract_strided_slice %70 {offsets = [2, 0, 0], sizes = [2, 8, 16], strides = [1, 1, 1]} : vector<4x8x16xf32> to vector<2x8x16xf32>
    %74 = vector.shape_cast %73 : vector<2x8x16xf32> to vector<16x16xf32>
    %75 = tpu.concatenate %72, %74 in 1 : vector<16x16xf32>, vector<16x16xf32> -> vector<16x32xf32>
    %76 = arith.addf %75, %22 : vector<16x32xf32>
    %c0_21 = arith.constant 0 : index
    %c0_22 = arith.constant 0 : index
    %c0_23 = arith.constant 0 : index
    %77 = vector.load %arg6[%c0_21, %c0_22, %c0_23] : memref<2x1x32xf32, #tpu.memory_space<vmem>>, vector<1x1x32xf32>
    %78 = vector.shape_cast %77 : vector<1x1x32xf32> to vector<1x32xf32>
    %c0_24 = arith.constant 0 : index
    %c0_25 = arith.constant 0 : index
    %c0_26 = arith.constant 0 : index
    %79 = vector.load %arg7[%c0_24, %c0_25, %c0_26] : memref<2x1x32xf32, #tpu.memory_space<vmem>>, vector<1x1x32xf32>
    %80 = vector.shape_cast %79 : vector<1x1x32xf32> to vector<1x32xf32>
    %cst_27 = arith.constant dense<0.000000e+00> : vector<16xf32>
    %81 = vector.multi_reduction <add>, %76, %cst_27 [1] : vector<16x32xf32> to vector<16xf32>
    %82 = vector.shape_cast %81 : vector<16xf32> to vector<16x1xf32>
    %cst_28 = arith.constant 3.200000e+01 : f32
    %83 = vector.broadcast %cst_28 : f32 to vector<16x1xf32>
    %84 = arith.divf %82, %83 : vector<16x1xf32>
    %85 = vector.broadcast %84 : vector<16x1xf32> to vector<16x32xf32>
    %86 = arith.subf %76, %85 : vector<16x32xf32>
    %87 = arith.mulf %86, %86 : vector<16x32xf32>
    %cst_29 = arith.constant dense<0.000000e+00> : vector<16xf32>
    %88 = vector.multi_reduction <add>, %87, %cst_29 [1] : vector<16x32xf32> to vector<16xf32>
    %89 = vector.shape_cast %88 : vector<16xf32> to vector<16x1xf32>
    %cst_30 = arith.constant 3.200000e+01 : f32
    %90 = vector.broadcast %cst_30 : f32 to vector<16x1xf32>
    %91 = arith.divf %89, %90 : vector<16x1xf32>
    %92 = vector.broadcast %84 : vector<16x1xf32> to vector<16x32xf32>
    %93 = arith.subf %76, %92 : vector<16x32xf32>
    %cst_31 = arith.constant 9.99999974E-6 : f32
    %94 = vector.broadcast %cst_31 : f32 to vector<16x1xf32>
    %95 = arith.addf %91, %94 : vector<16x1xf32>
    %96 = math.rsqrt %95 : vector<16x1xf32>
    %97 = vector.broadcast %96 : vector<16x1xf32> to vector<16x32xf32>
    %98 = arith.mulf %93, %97 : vector<16x32xf32>
    %99 = vector.broadcast %78 : vector<1x32xf32> to vector<16x32xf32>
    %100 = arith.mulf %98, %99 : vector<16x32xf32>
    %101 = vector.broadcast %80 : vector<1x32xf32> to vector<16x32xf32>
    %102 = arith.addf %100, %101 : vector<16x32xf32>
    %c0_32 = arith.constant 0 : index
    %c0_33 = arith.constant 0 : index
    %c0_34 = arith.constant 0 : index
    %103 = vector.load %arg8[%c0_32, %c0_33, %c0_34] : memref<2x32x32xf32, #tpu.memory_space<vmem>>, vector<1x32x32xf32>
    %104 = vector.shape_cast %103 : vector<1x32x32xf32> to vector<32x32xf32>
    %cst_35 = arith.constant dense<0.000000e+00> : vector<16x32xf32>
    %105 = tpu.matmul %102, %104, %cst_35 {dimension_numbers = #tpu.dot_dimension_numbers<[1], [0], [0], [1], [0, 0, 1, 1], [], []>} : vector<16x32xf32>, vector<32x32xf32>, vector<16x32xf32> -> vector<16x32xf32>
    %c0_36 = arith.constant 0 : index
    %c0_37 = arith.constant 0 : index
    %c0_38 = arith.constant 0 : index
    %106 = vector.load %arg9[%c0_36, %c0_37, %c0_38] : memref<2x1x32xf32, #tpu.memory_space<vmem>>, vector<1x1x32xf32>
    %107 = vector.shape_cast %106 : vector<1x1x32xf32> to vector<1x32xf32>
    %108 = vector.broadcast %107 : vector<1x32xf32> to vector<16x32xf32>
    %109 = arith.addf %105, %108 : vector<16x32xf32>
    %cst_39 = arith.constant 0.000000e+00 : f32
    %110 = vector.broadcast %cst_39 : f32 to vector<16x32xf32>
    %111 = arith.maximumf %109, %110 : vector<16x32xf32>
    %c0_40 = arith.constant 0 : index
    %c0_41 = arith.constant 0 : index
    %c0_42 = arith.constant 0 : index
    %112 = vector.load %arg10[%c0_40, %c0_41, %c0_42] : memref<2x32x32xf32, #tpu.memory_space<vmem>>, vector<1x32x32xf32>
    %113 = vector.shape_cast %112 : vector<1x32x32xf32> to vector<32x32xf32>
    %cst_43 = arith.constant dense<0.000000e+00> : vector<16x32xf32>
    %114 = tpu.matmul %111, %113, %cst_43 {dimension_numbers = #tpu.dot_dimension_numbers<[1], [0], [0], [1], [0, 0, 1, 1], [], []>} : vector<16x32xf32>, vector<32x32xf32>, vector<16x32xf32> -> vector<16x32xf32>
    %c0_44 = arith.constant 0 : index
    %c0_45 = arith.constant 0 : index
    %c0_46 = arith.constant 0 : index
    %115 = vector.load %arg11[%c0_44, %c0_45, %c0_46] : memref<2x1x32xf32, #tpu.memory_space<vmem>>, vector<1x1x32xf32>
    %116 = vector.shape_cast %115 : vector<1x1x32xf32> to vector<1x32xf32>
    %117 = vector.broadcast %116 : vector<1x32xf32> to vector<16x32xf32>
    %118 = arith.addf %114, %117 : vector<16x32xf32>
    %119 = arith.addf %118, %102 : vector<16x32xf32>
    %c0_47 = arith.constant 0 : index
    %c0_48 = arith.constant 0 : index
    %c0_49 = arith.constant 0 : index
    %120 = vector.load %arg12[%c0_47, %c0_48, %c0_49] : memref<2x1x32xf32, #tpu.memory_space<vmem>>, vector<1x1x32xf32>
    %121 = vector.shape_cast %120 : vector<1x1x32xf32> to vector<1x32xf32>
    %c0_50 = arith.constant 0 : index
    %c0_51 = arith.constant 0 : index
    %c0_52 = arith.constant 0 : index
    %122 = vector.load %arg13[%c0_50, %c0_51, %c0_52] : memref<2x1x32xf32, #tpu.memory_space<vmem>>, vector<1x1x32xf32>
    %123 = vector.shape_cast %122 : vector<1x1x32xf32> to vector<1x32xf32>
    %cst_53 = arith.constant dense<0.000000e+00> : vector<16xf32>
    %124 = vector.multi_reduction <add>, %119, %cst_53 [1] : vector<16x32xf32> to vector<16xf32>
    %125 = vector.shape_cast %124 : vector<16xf32> to vector<16x1xf32>
    %cst_54 = arith.constant 3.200000e+01 : f32
    %126 = vector.broadcast %cst_54 : f32 to vector<16x1xf32>
    %127 = arith.divf %125, %126 : vector<16x1xf32>
    %128 = vector.broadcast %127 : vector<16x1xf32> to vector<16x32xf32>
    %129 = arith.subf %119, %128 : vector<16x32xf32>
    %130 = arith.mulf %129, %129 : vector<16x32xf32>
    %cst_55 = arith.constant dense<0.000000e+00> : vector<16xf32>
    %131 = vector.multi_reduction <add>, %130, %cst_55 [1] : vector<16x32xf32> to vector<16xf32>
    %132 = vector.shape_cast %131 : vector<16xf32> to vector<16x1xf32>
    %cst_56 = arith.constant 3.200000e+01 : f32
    %133 = vector.broadcast %cst_56 : f32 to vector<16x1xf32>
    %134 = arith.divf %132, %133 : vector<16x1xf32>
    %135 = vector.broadcast %127 : vector<16x1xf32> to vector<16x32xf32>
    %136 = arith.subf %119, %135 : vector<16x32xf32>
    %cst_57 = arith.constant 9.99999974E-6 : f32
    %137 = vector.broadcast %cst_57 : f32 to vector<16x1xf32>
    %138 = arith.addf %134, %137 : vector<16x1xf32>
    %139 = math.rsqrt %138 : vector<16x1xf32>
    %140 = vector.broadcast %139 : vector<16x1xf32> to vector<16x32xf32>
    %141 = arith.mulf %136, %140 : vector<16x32xf32>
    %142 = vector.broadcast %121 : vector<1x32xf32> to vector<16x32xf32>
    %143 = arith.mulf %141, %142 : vector<16x32xf32>
    %144 = vector.broadcast %123 : vector<1x32xf32> to vector<16x32xf32>
    %145 = arith.addf %143, %144 : vector<16x32xf32>
    %c1 = arith.constant 1 : index
    %c0_58 = arith.constant 0 : index
    %c0_59 = arith.constant 0 : index
    %146 = vector.load %arg4[%c1, %c0_58, %c0_59] : memref<2x32x96xf32, #tpu.memory_space<vmem>>, vector<1x32x96xf32>
    %147 = vector.shape_cast %146 : vector<1x32x96xf32> to vector<32x96xf32>
    %cst_60 = arith.constant dense<0.000000e+00> : vector<16x96xf32>
    %148 = tpu.matmul %145, %147, %cst_60 {dimension_numbers = #tpu.dot_dimension_numbers<[1], [0], [0], [1], [0, 0, 1, 1], [], []>} : vector<16x32xf32>, vector<32x96xf32>, vector<16x96xf32> -> vector<16x96xf32>
    %c1_61 = arith.constant 1 : index
    %c0_62 = arith.constant 0 : index
    %c0_63 = arith.constant 0 : index
    %149 = vector.load %arg5[%c1_61, %c0_62, %c0_63] : memref<2x1x96xf32, #tpu.memory_space<vmem>>, vector<1x1x96xf32>
    %150 = vector.shape_cast %149 : vector<1x1x96xf32> to vector<1x96xf32>
    %151 = vector.broadcast %150 : vector<1x96xf32> to vector<16x96xf32>
    %152 = arith.addf %148, %151 : vector<16x96xf32>
    %153 = vector.extract_strided_slice %152 {offsets = [0, 0], sizes = [16, 16], strides = [1, 1]} : vector<16x96xf32> to vector<16x16xf32>
    %154 = vector.shape_cast %153 : vector<16x16xf32> to vector<2x8x16xf32>
    %155 = vector.extract_strided_slice %152 {offsets = [0, 16], sizes = [16, 16], strides = [1, 1]} : vector<16x96xf32> to vector<16x16xf32>
    %156 = vector.shape_cast %155 : vector<16x16xf32> to vector<2x8x16xf32>
    %157 = tpu.concatenate %154, %156 in 0 : vector<2x8x16xf32>, vector<2x8x16xf32> -> vector<4x8x16xf32>
    %158 = vector.extract_strided_slice %152 {offsets = [0, 32], sizes = [16, 16], strides = [1, 1]} : vector<16x96xf32> to vector<16x16xf32>
    %159 = vector.shape_cast %158 : vector<16x16xf32> to vector<2x8x16xf32>
    %160 = vector.extract_strided_slice %152 {offsets = [0, 48], sizes = [16, 16], strides = [1, 1]} : vector<16x96xf32> to vector<16x16xf32>
    %161 = vector.shape_cast %160 : vector<16x16xf32> to vector<2x8x16xf32>
    %162 = tpu.concatenate %159, %161 in 0 : vector<2x8x16xf32>, vector<2x8x16xf32> -> vector<4x8x16xf32>
    %163 = vector.extract_strided_slice %152 {offsets = [0, 64], sizes = [16, 16], strides = [1, 1]} : vector<16x96xf32> to vector<16x16xf32>
    %164 = vector.shape_cast %163 : vector<16x16xf32> to vector<2x8x16xf32>
    %165 = vector.extract_strided_slice %152 {offsets = [0, 80], sizes = [16, 16], strides = [1, 1]} : vector<16x96xf32> to vector<16x16xf32>
    %166 = vector.shape_cast %165 : vector<16x16xf32> to vector<2x8x16xf32>
    %167 = tpu.concatenate %164, %166 in 0 : vector<2x8x16xf32>, vector<2x8x16xf32> -> vector<4x8x16xf32>
    "tpu.trace_start"() <{level = 10 : i32, message = "bqd,bkd->bqk"}> : () -> ()
    %cst_64 = arith.constant dense<0.000000e+00> : vector<4x8x8xf32>
    %168 = tpu.matmul %157, %162, %cst_64 {dimension_numbers = #tpu.dot_dimension_numbers<[2], [2], [1], [1], [0, 0, 0, 1, 1, 1], [0], [0]>} : vector<4x8x16xf32>, vector<4x8x16xf32>, vector<4x8x8xf32> -> vector<4x8x8xf32>
    "tpu.trace_stop"() : () -> ()
    %cst_65 = arith.constant 2.500000e-01 : f32
    %169 = vector.broadcast %cst_65 : f32 to vector<4x8x8xf32>
    %170 = arith.mulf %168, %169 : vector<4x8x8xf32>
    %171 = vector.broadcast %27 : vector<4x1x8xf32> to vector<4x8x8xf32>
    %172 = arith.addf %170, %171 : vector<4x8x8xf32>
    %173 = vector.shape_cast %172 : vector<4x8x8xf32> to vector<1x4x8x8xf32>
    %cst_66 = arith.constant dense<0xFF800000> : vector<1xf32>
    %174 = vector.multi_reduction <maximumf>, %173, %cst_66 [1, 2, 3] : vector<1x4x8x8xf32> to vector<1xf32>
    %175 = vector.shape_cast %174 : vector<1xf32> to vector<1x1x1x1xf32>
    %176 = vector.extract %175[0, 0, 0, 0] : f32 from vector<1x1x1x1xf32>
    %177 = vector.broadcast %176 : f32 to vector<4x8x8xf32>
    %178 = arith.subf %172, %177 : vector<4x8x8xf32>
    %179 = math.exp %178 : vector<4x8x8xf32>
    %cst_67 = arith.constant dense<0.000000e+00> : vector<4x8xf32>
    %180 = vector.multi_reduction <add>, %179, %cst_67 [2] : vector<4x8x8xf32> to vector<4x8xf32>
    %181 = vector.shape_cast %180 : vector<4x8xf32> to vector<4x8x1xf32>
    %cst_68 = arith.constant 0.000000e+00 : f32
    %182 = vector.broadcast %cst_68 : f32 to vector<4x8x1xf32>
    %183 = arith.cmpf oeq, %181, %182 : vector<4x8x1xf32>
    %cst_69 = arith.constant 1.000000e+00 : f32
    %184 = vector.broadcast %cst_69 : f32 to vector<4x8x1xf32>
    %185 = arith.select %183, %184, %181 : vector<4x8x1xi1>, vector<4x8x1xf32>
    %186 = vector.broadcast %185 : vector<4x8x1xf32> to vector<4x8x8xf32>
    %187 = arith.divf %179, %186 : vector<4x8x8xf32>
    "tpu.trace_start"() <{level = 10 : i32, message = "bqk,bkd->bqd"}> : () -> ()
    %cst_70 = arith.constant dense<0.000000e+00> : vector<4x8x16xf32>
    %188 = tpu.matmul %187, %167, %cst_70 {dimension_numbers = #tpu.dot_dimension_numbers<[2], [1], [1], [2], [0, 0, 0, 1, 1, 2], [0], [0]>} : vector<4x8x8xf32>, vector<4x8x16xf32>, vector<4x8x16xf32> -> vector<4x8x16xf32>
    "tpu.trace_stop"() : () -> ()
    %189 = vector.extract_strided_slice %188 {offsets = [0, 0, 0], sizes = [2, 8, 16], strides = [1, 1, 1]} : vector<4x8x16xf32> to vector<2x8x16xf32>
    %190 = vector.shape_cast %189 : vector<2x8x16xf32> to vector<16x16xf32>
    %191 = vector.extract_strided_slice %188 {offsets = [2, 0, 0], sizes = [2, 8, 16], strides = [1, 1, 1]} : vector<4x8x16xf32> to vector<2x8x16xf32>
    %192 = vector.shape_cast %191 : vector<2x8x16xf32> to vector<16x16xf32>
    %193 = tpu.concatenate %190, %192 in 1 : vector<16x16xf32>, vector<16x16xf32> -> vector<16x32xf32>
    %194 = arith.addf %193, %145 : vector<16x32xf32>
    %c1_71 = arith.constant 1 : index
    %c0_72 = arith.constant 0 : index
    %c0_73 = arith.constant 0 : index
    %195 = vector.load %arg6[%c1_71, %c0_72, %c0_73] : memref<2x1x32xf32, #tpu.memory_space<vmem>>, vector<1x1x32xf32>
    %196 = vector.shape_cast %195 : vector<1x1x32xf32> to vector<1x32xf32>
    %c1_74 = arith.constant 1 : index
    %c0_75 = arith.constant 0 : index
    %c0_76 = arith.constant 0 : index
    %197 = vector.load %arg7[%c1_74, %c0_75, %c0_76] : memref<2x1x32xf32, #tpu.memory_space<vmem>>, vector<1x1x32xf32>
    %198 = vector.shape_cast %197 : vector<1x1x32xf32> to vector<1x32xf32>
    %cst_77 = arith.constant dense<0.000000e+00> : vector<16xf32>
    %199 = vector.multi_reduction <add>, %194, %cst_77 [1] : vector<16x32xf32> to vector<16xf32>
    %200 = vector.shape_cast %199 : vector<16xf32> to vector<16x1xf32>
    %cst_78 = arith.constant 3.200000e+01 : f32
    %201 = vector.broadcast %cst_78 : f32 to vector<16x1xf32>
    %202 = arith.divf %200, %201 : vector<16x1xf32>
    %203 = vector.broadcast %202 : vector<16x1xf32> to vector<16x32xf32>
    %204 = arith.subf %194, %203 : vector<16x32xf32>
    %205 = arith.mulf %204, %204 : vector<16x32xf32>
    %cst_79 = arith.constant dense<0.000000e+00> : vector<16xf32>
    %206 = vector.multi_reduction <add>, %205, %cst_79 [1] : vector<16x32xf32> to vector<16xf32>
    %207 = vector.shape_cast %206 : vector<16xf32> to vector<16x1xf32>
    %cst_80 = arith.constant 3.200000e+01 : f32
    %208 = vector.broadcast %cst_80 : f32 to vector<16x1xf32>
    %209 = arith.divf %207, %208 : vector<16x1xf32>
    %210 = vector.broadcast %202 : vector<16x1xf32> to vector<16x32xf32>
    %211 = arith.subf %194, %210 : vector<16x32xf32>
    %cst_81 = arith.constant 9.99999974E-6 : f32
    %212 = vector.broadcast %cst_81 : f32 to vector<16x1xf32>
    %213 = arith.addf %209, %212 : vector<16x1xf32>
    %214 = math.rsqrt %213 : vector<16x1xf32>
    %215 = vector.broadcast %214 : vector<16x1xf32> to vector<16x32xf32>
    %216 = arith.mulf %211, %215 : vector<16x32xf32>
    %217 = vector.broadcast %196 : vector<1x32xf32> to vector<16x32xf32>
    %218 = arith.mulf %216, %217 : vector<16x32xf32>
    %219 = vector.broadcast %198 : vector<1x32xf32> to vector<16x32xf32>
    %220 = arith.addf %218, %219 : vector<16x32xf32>
    %c1_82 = arith.constant 1 : index
    %c0_83 = arith.constant 0 : index
    %c0_84 = arith.constant 0 : index
    %221 = vector.load %arg8[%c1_82, %c0_83, %c0_84] : memref<2x32x32xf32, #tpu.memory_space<vmem>>, vector<1x32x32xf32>
    %222 = vector.shape_cast %221 : vector<1x32x32xf32> to vector<32x32xf32>
    %cst_85 = arith.constant dense<0.000000e+00> : vector<16x32xf32>
    %223 = tpu.matmul %220, %222, %cst_85 {dimension_numbers = #tpu.dot_dimension_numbers<[1], [0], [0], [1], [0, 0, 1, 1], [], []>} : vector<16x32xf32>, vector<32x32xf32>, vector<16x32xf32> -> vector<16x32xf32>
    %c1_86 = arith.constant 1 : index
    %c0_87 = arith.constant 0 : index
    %c0_88 = arith.constant 0 : index
    %224 = vector.load %arg9[%c1_86, %c0_87, %c0_88] : memref<2x1x32xf32, #tpu.memory_space<vmem>>, vector<1x1x32xf32>
    %225 = vector.shape_cast %224 : vector<1x1x32xf32> to vector<1x32xf32>
    %226 = vector.broadcast %225 : vector<1x32xf32> to vector<16x32xf32>
    %227 = arith.addf %223, %226 : vector<16x32xf32>
    %cst_89 = arith.constant 0.000000e+00 : f32
    %228 = vector.broadcast %cst_89 : f32 to vector<16x32xf32>
    %229 = arith.maximumf %227, %228 : vector<16x32xf32>
    %c1_90 = arith.constant 1 : index
    %c0_91 = arith.constant 0 : index
    %c0_92 = arith.constant 0 : index
    %230 = vector.load %arg10[%c1_90, %c0_91, %c0_92] : memref<2x32x32xf32, #tpu.memory_space<vmem>>, vector<1x32x32xf32>
    %231 = vector.shape_cast %230 : vector<1x32x32xf32> to vector<32x32xf32>
    %cst_93 = arith.constant dense<0.000000e+00> : vector<16x32xf32>
    %232 = tpu.matmul %229, %231, %cst_93 {dimension_numbers = #tpu.dot_dimension_numbers<[1], [0], [0], [1], [0, 0, 1, 1], [], []>} : vector<16x32xf32>, vector<32x32xf32>, vector<16x32xf32> -> vector<16x32xf32>
    %c1_94 = arith.constant 1 : index
    %c0_95 = arith.constant 0 : index
    %c0_96 = arith.constant 0 : index
    %233 = vector.load %arg11[%c1_94, %c0_95, %c0_96] : memref<2x1x32xf32, #tpu.memory_space<vmem>>, vector<1x1x32xf32>
    %234 = vector.shape_cast %233 : vector<1x1x32xf32> to vector<1x32xf32>
    %235 = vector.broadcast %234 : vector<1x32xf32> to vector<16x32xf32>
    %236 = arith.addf %232, %235 : vector<16x32xf32>
    %237 = arith.addf %236, %220 : vector<16x32xf32>
    %c1_97 = arith.constant 1 : index
    %c0_98 = arith.constant 0 : index
    %c0_99 = arith.constant 0 : index
    %238 = vector.load %arg12[%c1_97, %c0_98, %c0_99] : memref<2x1x32xf32, #tpu.memory_space<vmem>>, vector<1x1x32xf32>
    %239 = vector.shape_cast %238 : vector<1x1x32xf32> to vector<1x32xf32>
    %c1_100 = arith.constant 1 : index
    %c0_101 = arith.constant 0 : index
    %c0_102 = arith.constant 0 : index
    %240 = vector.load %arg13[%c1_100, %c0_101, %c0_102] : memref<2x1x32xf32, #tpu.memory_space<vmem>>, vector<1x1x32xf32>
    %241 = vector.shape_cast %240 : vector<1x1x32xf32> to vector<1x32xf32>
    %cst_103 = arith.constant dense<0.000000e+00> : vector<16xf32>
    %242 = vector.multi_reduction <add>, %237, %cst_103 [1] : vector<16x32xf32> to vector<16xf32>
    %243 = vector.shape_cast %242 : vector<16xf32> to vector<16x1xf32>
    %cst_104 = arith.constant 3.200000e+01 : f32
    %244 = vector.broadcast %cst_104 : f32 to vector<16x1xf32>
    %245 = arith.divf %243, %244 : vector<16x1xf32>
    %246 = vector.broadcast %245 : vector<16x1xf32> to vector<16x32xf32>
    %247 = arith.subf %237, %246 : vector<16x32xf32>
    %248 = arith.mulf %247, %247 : vector<16x32xf32>
    %cst_105 = arith.constant dense<0.000000e+00> : vector<16xf32>
    %249 = vector.multi_reduction <add>, %248, %cst_105 [1] : vector<16x32xf32> to vector<16xf32>
    %250 = vector.shape_cast %249 : vector<16xf32> to vector<16x1xf32>
    %cst_106 = arith.constant 3.200000e+01 : f32
    %251 = vector.broadcast %cst_106 : f32 to vector<16x1xf32>
    %252 = arith.divf %250, %251 : vector<16x1xf32>
    %253 = vector.broadcast %245 : vector<16x1xf32> to vector<16x32xf32>
    %254 = arith.subf %237, %253 : vector<16x32xf32>
    %cst_107 = arith.constant 9.99999974E-6 : f32
    %255 = vector.broadcast %cst_107 : f32 to vector<16x1xf32>
    %256 = arith.addf %252, %255 : vector<16x1xf32>
    %257 = math.rsqrt %256 : vector<16x1xf32>
    %258 = vector.broadcast %257 : vector<16x1xf32> to vector<16x32xf32>
    %259 = arith.mulf %254, %258 : vector<16x32xf32>
    %260 = vector.broadcast %239 : vector<1x32xf32> to vector<16x32xf32>
    %261 = arith.mulf %259, %260 : vector<16x32xf32>
    %262 = vector.broadcast %241 : vector<1x32xf32> to vector<16x32xf32>
    %263 = arith.addf %261, %262 : vector<16x32xf32>
    %264 = vector.shape_cast %263 : vector<16x32xf32> to vector<2x8x32xf32>
    %265 = vector.shape_cast %5 : vector<2x8xf32> to vector<2x8x1xf32>
    %266 = vector.broadcast %265 : vector<2x8x1xf32> to vector<2x8x32xf32>
    %267 = arith.mulf %264, %266 : vector<2x8x32xf32>
    %c1_i32 = arith.constant 1 : i32
    %268 = vector.broadcast %c1_i32 : i32 to vector<2x1xi32>
    %269 = arith.subi %0, %268 : vector<2x1xi32>
    %270 = vector.broadcast %269 : vector<2x1xi32> to vector<2x8xi32>
    %271 = arith.cmpi eq, %1, %270 : vector<2x8xi32>
    %272 = arith.extui %271 : vector<2x8xi1> to vector<2x8xi32>
    %273 = arith.sitofp %272 : vector<2x8xi32> to vector<2x8xf32>
    %274 = vector.shape_cast %273 : vector<2x8xf32> to vector<2x8x1xf32>
    %275 = vector.broadcast %274 : vector<2x8x1xf32> to vector<2x8x32xf32>
    %276 = arith.mulf %267, %275 : vector<2x8x32xf32>
    %cst_108 = arith.constant dense<0.000000e+00> : vector<2x32xf32>
    %277 = vector.multi_reduction <add>, %276, %cst_108 [1] : vector<2x8x32xf32> to vector<2x32xf32>
    %c0_109 = arith.constant 0 : index
    %c0_110 = arith.constant 0 : index
    %278 = vector.load %arg14[%c0_109, %c0_110] : memref<2x32xf32, #tpu.memory_space<vmem>>, vector<2x32xf32>
    tpu.vector_store %arg14[%c0_109, %c0_110], %277 {strides = array<i32>} : memref<2x32xf32, #tpu.memory_space<vmem>>, vector<2x32xf32>,
    return
  }
  func.func @transform_0(%arg0: i32) -> (i32, i32, i32) {
    %c0_i32 = arith.constant 0 : i32
    %c0_i32_0 = arith.constant 0 : i32
    %c0_i32_1 = arith.constant 0 : i32
    return %arg0, %c0_i32, %c0_i32_0 : i32, i32, i32
  }
  func.func @transform_1(%arg0: i32) -> (i32, i32) {
    %c0_i32 = arith.constant 0 : i32
    %c0_i32_0 = arith.constant 0 : i32
    return %arg0, %c0_i32 : i32, i32
  }
  func.func @transform_2(%arg0: i32) -> (i32, i32) {
    %c0_i32 = arith.constant 0 : i32
    %c0_i32_0 = arith.constant 0 : i32
    %c0_i32_1 = arith.constant 0 : i32
    return %c0_i32, %c0_i32_0 : i32, i32
  }
  func.func @transform_3(%arg0: i32) -> (i32, i32, i32) {
    %c0_i32 = arith.constant 0 : i32
    %c0_i32_0 = arith.constant 0 : i32
    %c0_i32_1 = arith.constant 0 : i32
    %c0_i32_2 = arith.constant 0 : i32
    return %c0_i32, %c0_i32_0, %c0_i32_1 : i32, i32, i32
  }
  func.func @transform_4(%arg0: i32) -> (i32, i32, i32) {
    %c0_i32 = arith.constant 0 : i32
    %c0_i32_0 = arith.constant 0 : i32
    %c0_i32_1 = arith.constant 0 : i32
    %c0_i32_2 = arith.constant 0 : i32
    return %c0_i32, %c0_i32_0, %c0_i32_1 : i32, i32, i32
  }
  func.func @transform_5(%arg0: i32) -> (i32, i32, i32) {
    %c0_i32 = arith.constant 0 : i32
    %c0_i32_0 = arith.constant 0 : i32
    %c0_i32_1 = arith.constant 0 : i32
    %c0_i32_2 = arith.constant 0 : i32
    return %c0_i32, %c0_i32_0, %c0_i32_1 : i32, i32, i32
  }
  func.func @transform_6(%arg0: i32) -> (i32, i32, i32) {
    %c0_i32 = arith.constant 0 : i32
    %c0_i32_0 = arith.constant 0 : i32
    %c0_i32_1 = arith.constant 0 : i32
    %c0_i32_2 = arith.constant 0 : i32
    return %c0_i32, %c0_i32_0, %c0_i32_1 : i32, i32, i32
  }
  func.func @transform_7(%arg0: i32) -> (i32, i32, i32) {
    %c0_i32 = arith.constant 0 : i32
    %c0_i32_0 = arith.constant 0 : i32
    %c0_i32_1 = arith.constant 0 : i32
    %c0_i32_2 = arith.constant 0 : i32
    return %c0_i32, %c0_i32_0, %c0_i32_1 : i32, i32, i32
  }
  func.func @transform_8(%arg0: i32) -> (i32, i32, i32) {
    %c0_i32 = arith.constant 0 : i32
    %c0_i32_0 = arith.constant 0 : i32
    %c0_i32_1 = arith.constant 0 : i32
    %c0_i32_2 = arith.constant 0 : i32
    return %c0_i32, %c0_i32_0, %c0_i32_1 : i32, i32, i32
  }
  func.func @transform_9(%arg0: i32) -> (i32, i32, i32) {
    %c0_i32 = arith.constant 0 : i32
    %c0_i32_0 = arith.constant 0 : i32
    %c0_i32_1 = arith.constant 0 : i32
    %c0_i32_2 = arith.constant 0 : i32
    return %c0_i32, %c0_i32_0, %c0_i32_1 : i32, i32, i32
  }
  func.func @transform_10(%arg0: i32) -> (i32, i32, i32) {
    %c0_i32 = arith.constant 0 : i32
    %c0_i32_0 = arith.constant 0 : i32
    %c0_i32_1 = arith.constant 0 : i32
    %c0_i32_2 = arith.constant 0 : i32
    return %c0_i32, %c0_i32_0, %c0_i32_1 : i32, i32, i32
  }
  func.func @transform_11(%arg0: i32) -> (i32, i32, i32) {
    %c0_i32 = arith.constant 0 : i32
    %c0_i32_0 = arith.constant 0 : i32
    %c0_i32_1 = arith.constant 0 : i32
    %c0_i32_2 = arith.constant 0 : i32
    return %c0_i32, %c0_i32_0, %c0_i32_1 : i32, i32, i32
  }
  func.func @transform_12(%arg0: i32) -> (i32, i32, i32) {
    %c0_i32 = arith.constant 0 : i32
    %c0_i32_0 = arith.constant 0 : i32
    %c0_i32_1 = arith.constant 0 : i32
    %c0_i32_2 = arith.constant 0 : i32
    return %c0_i32, %c0_i32_0, %c0_i32_1 : i32, i32, i32
  }
  func.func @transform_13(%arg0: i32) -> (i32, i32) {
    %c0_i32 = arith.constant 0 : i32
    %c0_i32_0 = arith.constant 0 : i32
    return %arg0, %c0_i32 : i32, i32
  }
}

</mosaic_0001>

<llo_original>
// kernel: tpu_custom_call.1
$region0: #{tpu_custom_call.1}
  #allocation0 [shape = 'u32[]', space=smem, size = 0x4, offset = 0x4, fixed_abs, tag = 'smem constant byte address 0x4 - core index']
  #allocation1 [shape = 'u32[144,128]{1,0:T(1,128)}', space=vmem, size = 0x12000, scoped, tag = 'internal scratch']
  %s0 = inlined_call_operand.hbm [shape: f32[2,8,32], index: 0, kind: input, shape index: {}]
  %s1 = inlined_call_operand.vmem [shape: s32[2,1], index: 1, kind: input, shape index: {}]
  %s2 = inlined_call_operand.hbm [shape: f32[17,32], index: 2, kind: input, shape index: {}]
  %s3 = inlined_call_operand.hbm [shape: f32[2,32,96], index: 3, kind: input, shape index: {}]
  %s4 = inlined_call_operand.vmem [shape: f32[2,1,96], index: 4, kind: input, shape index: {}]
  %s5 = inlined_call_operand.vmem [shape: f32[2,1,32], index: 5, kind: input, shape index: {}]
  %s6 = inlined_call_operand.vmem [shape: f32[2,1,32], index: 6, kind: input, shape index: {}]
  %s7 = inlined_call_operand.hbm [shape: f32[2,32,32], index: 7, kind: input, shape index: {}]
  %s8 = inlined_call_operand.vmem [shape: f32[2,1,32], index: 8, kind: input, shape index: {}]
  %s9 = inlined_call_operand.hbm [shape: f32[2,32,32], index: 9, kind: input, shape index: {}]
  %s10 = inlined_call_operand.vmem [shape: f32[2,1,32], index: 10, kind: input, shape index: {}]
  %s11 = inlined_call_operand.vmem [shape: f32[2,1,32], index: 11, kind: input, shape index: {}]
  %s12 = inlined_call_operand.vmem [shape: f32[2,1,32], index: 12, kind: input, shape index: {}]
  %s13 = inlined_call_operand.hbm [shape: f32[2,32], index: 13, kind: output, shape index: {}]
  %s14 = sld [smem:[#allocation0]]
  $region82: #{tpu_custom_call.1} parent=0
    _
  %s16 = ssub.s32 1, %s14
  %s17 = scalar_select 0, %s16, %s14
  $region1: #{tpu_custom_call.1} parent=0
    #allocation2 [shape = 'u8[8192]{0}', space=vmem, size = 0x2000, scoped, tag = 'input window, operand 0, single buffered']
    #allocation3 [shape = 's32[1]{0}', space=sflag, size = 0x4, scoped, tag = 'scoped memory for tpu_custom_call.1']
    #allocation4 [shape = 's32[1]{0}', space=sflag, size = 0x4, scoped, tag = 'scoped memory for tpu_custom_call.1']
    #allocation5 [shape = 'u8[12288]{0}', space=vmem, size = 0x3000, scoped, tag = 'input window, operand 2, single buffered']
    #allocation6 [shape = 's32[1]{0}', space=sflag, size = 0x4, scoped, tag = 'scoped memory for tpu_custom_call.1']
    #allocation7 [shape = 'u8[32768]{0}', space=vmem, size = 0x8000, scoped, tag = 'input window, operand 3, single buffered']
    #allocation8 [shape = 'u8[32768]{0}', space=vmem, size = 0x8000, scoped, tag = 'input window, operand 7, single buffered']
    #allocation9 [shape = 's32[1]{0}', space=sflag, size = 0x4, scoped, tag = 'scoped memory for tpu_custom_call.1']
    #allocation10 [shape = 'u8[32768]{0}', space=vmem, size = 0x8000, scoped, tag = 'input window, operand 9, single buffered']
    #allocation11 [shape = 'u8[1024]{0}', space=vmem, size = 0x400, scoped, tag = 'output window, operand 0, single buffered']
    %18 = vsyncpa [#allocation3], 0
    %19 = vsyncpa [#allocation6], 0
    %20 = vsyncpa [#allocation9], 0
    %21 = vsyncpa [#allocation4], 0
    // Predicated region
    $region2: #{tpu_custom_call.1} parent=1 // pred_check
      _
    $region3: #{tpu_custom_call.1} parent=1 // pred_check_branch
      %23 = sbr.rel (0) target = $region5
    $region4: #{tpu_custom_call.1} parent=1 // pred_region
      %s25 = ssub.s32 256, 256
      %26 = vsyncadd [#allocation3], %s25
      %s27 = sshll.u32 [#allocation2], 4
      %s28 = int_to_ptr.vmem [resolvable:$true] %s27
      %33 = dma.hbm_to_vmem [thread:$0]  %s0, 256, %s28, [#allocation3], 128, 128, 8
    $region5: #{tpu_custom_call.1} parent=1 // pred_fallthru
      _
    // Predicated region
    $region6: #{tpu_custom_call.1} parent=1 // pred_check
      _
    $region7: #{tpu_custom_call.1} parent=1 // pred_check_branch
      %35 = sbr.rel (0) target = $region9
    $region8: #{tpu_custom_call.1} parent=1 // pred_region
      _
    $region9: #{tpu_custom_call.1} parent=1 // pred_fallthru
      _
    // Predicated region
    $region10: #{tpu_custom_call.1} parent=1 // pred_check
      _
    $region11: #{tpu_custom_call.1} parent=1 // pred_check_branch
      %37 = sbr.rel (0) target = $region13
    $region12: #{tpu_custom_call.1} parent=1 // pred_region
      %s39 = ssub.s32 384, 384
      %40 = vsyncadd [#allocation6], %s39
      %s41 = sshll.u32 [#allocation5], 4
      %s42 = int_to_ptr.vmem [resolvable:$true] %s41
      %47 = dma.hbm_to_vmem [thread:$0]  %s2, 384, %s42, [#allocation6], 128, 128, 8
    $region13: #{tpu_custom_call.1} parent=1 // pred_fallthru
      _
    // Predicated region
    $region14: #{tpu_custom_call.1} parent=1 // pred_check
      _
    $region15: #{tpu_custom_call.1} parent=1 // pred_check_branch
      %49 = sbr.rel (0) target = $region17
    $region16: #{tpu_custom_call.1} parent=1 // pred_region
      %s51 = ssub.s32 1024, 1024
      %52 = vsyncadd [#allocation6], %s51
      %s53 = sshll.u32 [#allocation7], 4
      %s54 = int_to_ptr.vmem [resolvable:$true] %s53
      %59 = dma.hbm_to_vmem [thread:$0]  %s3, 1024, %s54, [#allocation6], 128, 128, 8
    $region17: #{tpu_custom_call.1} parent=1 // pred_fallthru
      _
    // Predicated region
    $region18: #{tpu_custom_call.1} parent=1 // pred_check
      _
    $region19: #{tpu_custom_call.1} parent=1 // pred_check_branch
      %61 = sbr.rel (0) target = $region21
    $region20: #{tpu_custom_call.1} parent=1 // pred_region
      _
    $region21: #{tpu_custom_call.1} parent=1 // pred_fallthru
      _
    // Predicated region
    $region22: #{tpu_custom_call.1} parent=1 // pred_check
      _
    $region23: #{tpu_custom_call.1} parent=1 // pred_check_branch
      %63 = sbr.rel (0) target = $region25
    $region24: #{tpu_custom_call.1} parent=1 // pred_region
      _
    $region25: #{tpu_custom_call.1} parent=1 // pred_fallthru
      _
    // Predicated region
    $region26: #{tpu_custom_call.1} parent=1 // pred_check
      _
    $region27: #{tpu_custom_call.1} parent=1 // pred_check_branch
      %65 = sbr.rel (0) target = $region29
    $region28: #{tpu_custom_call.1} parent=1 // pred_region
      _
    $region29: #{tpu_custom_call.1} parent=1 // pred_fallthru
      _
    // Predicated region
    $region30: #{tpu_custom_call.1} parent=1 // pred_check
      _
    $region31: #{tpu_custom_call.1} parent=1 // pred_check_branch
      %67 = sbr.rel (0) target = $region33
    $region32: #{tpu_custom_call.1} parent=1 // pred_region
      %s69 = ssub.s32 1024, 1024
      %70 = vsyncadd [#allocation9], %s69
      %s71 = sshll.u32 [#allocation8], 4
      %s72 = int_to_ptr.vmem [resolvable:$true] %s71
      %77 = dma.hbm_to_vmem [thread:$0]  %s7, 1024, %s72, [#allocation9], 128, 128, 8
    $region33: #{tpu_custom_call.1} parent=1 // pred_fallthru
      _
    // Predicated region
    $region34: #{tpu_custom_call.1} parent=1 // pred_check
      _
    $region35: #{tpu_custom_call.1} parent=1 // pred_check_branch
      %79 = sbr.rel (0) target = $region37
    $region36: #{tpu_custom_call.1} parent=1 // pred_region
      _
    $region37: #{tpu_custom_call.1} parent=1 // pred_fallthru
      _
    // Predicated region
    $region38: #{tpu_custom_call.1} parent=1 // pred_check
      _
    $region39: #{tpu_custom_call.1} parent=1 // pred_check_branch
      %81 = sbr.rel (0) target = $region41
    $region40: #{tpu_custom_call.1} parent=1 // pred_region
      %s83 = ssub.s32 1024, 1024
      %84 = vsyncadd [#allocation9], %s83
      %s85 = sshll.u32 [#allocation10], 4
      %s86 = int_to_ptr.vmem [resolvable:$true] %s85
      %91 = dma.hbm_to_vmem [thread:$0]  %s9, 1024, %s86, [#allocation9], 128, 128, 8
    $region41: #{tpu_custom_call.1} parent=1 // pred_fallthru
      _
    // Predicated region
    $region42: #{tpu_custom_call.1} parent=1 // pred_check
      _
    $region43: #{tpu_custom_call.1} parent=1 // pred_check_branch
      %93 = sbr.rel (0) target = $region45
    $region44: #{tpu_custom_call.1} parent=1 // pred_region
      _
    $region45: #{tpu_custom_call.1} parent=1 // pred_fallthru
      _
    // Predicated region
    $region46: #{tpu_custom_call.1} parent=1 // pred_check
      _
    $region47: #{tpu_custom_call.1} parent=1 // pred_check_branch
      %95 = sbr.rel (0) target = $region49
    $region48: #{tpu_custom_call.1} parent=1 // pred_region
      _
    $region49: #{tpu_custom_call.1} parent=1 // pred_fallthru
      _
    // Predicated region
    $region50: #{tpu_custom_call.1} parent=1 // pred_check
      _
    $region51: #{tpu_custom_call.1} parent=1 // pred_check_branch
      %97 = sbr.rel (0) target = $region53
    $region52: #{tpu_custom_call.1} parent=1 // pred_region
      _
    $region53: #{tpu_custom_call.1} parent=1 // pred_fallthru
      _
    // Predicated region
    $region54: #{tpu_custom_call.1} parent=1 // pred_check
      _
    $region55: #{tpu_custom_call.1} parent=1 // pred_check_branch
      %99 = sbr.rel (0) target = $region57
    $region56: #{tpu_custom_call.1} parent=1 // pred_region
      %100 = dma.done [#allocation3], 256
    $region57: #{tpu_custom_call.1} parent=1 // pred_fallthru
      _
    // Predicated region
    $region58: #{tpu_custom_call.1} parent=1 // pred_check
      _
    $region59: #{tpu_custom_call.1} parent=1 // pred_check_branch
      %102 = sbr.rel (0) target = $region61
    $region60: #{tpu_custom_call.1} parent=1 // pred_region
      %103 = dma.done [#allocation6], 384
    $region61: #{tpu_custom_call.1} parent=1 // pred_fallthru
      _
    // Predicated region
    $region62: #{tpu_custom_call.1} parent=1 // pred_check
      _
    $region63: #{tpu_custom_call.1} parent=1 // pred_check_branch
      %105 = sbr.rel (0) target = $region65
    $region64: #{tpu_custom_call.1} parent=1 // pred_region
      %106 = dma.done [#allocation6], 1024
    $region65: #{tpu_custom_call.1} parent=1 // pred_fallthru
      _
    // Predicated region
    $region66: #{tpu_custom_call.1} parent=1 // pred_check
      _
    $region67: #{tpu_custom_call.1} parent=1 // pred_check_branch
      %108 = sbr.rel (0) target = $region69
    $region68: #{tpu_custom_call.1} parent=1 // pred_region
      %109 = dma.done [#allocation9], 1024
    $region69: #{tpu_custom_call.1} parent=1 // pred_fallthru
      _
    // Predicated region
    $region70: #{tpu_custom_call.1} parent=1 // pred_check
      _
    $region71: #{tpu_custom_call.1} parent=1 // pred_check_branch
      %111 = sbr.rel (0) target = $region73
    $region72: #{tpu_custom_call.1} parent=1 // pred_region
      %112 = dma.done [#allocation9], 1024
    $region73: #{tpu_custom_call.1} parent=1 // pred_fallthru
      _
    %v113 = vld [vmem:[%s1] sm:$0x3]
    %v114 = vlaneseq
    %v115 = vand.u32 %v114, 127
    %116 = vset.pattern.permute.xlu0 0
    %117 = vperm.xlu0 %116, %v113
    %v118 = vpop.permute.xlu0 %117
    %vm119 = vcmp.lt.s32.totalorder %v115, %v118
    %v120 = vsel %vm119, 1, 0
    %v121 = vcvt.s32.f32 %v120
    %v122 = vld [vmem:[#allocation5] sm:$0xff]
    %v123 = vlaneseq
    %v124 = vshrl.u32 %v123, 7
    %v125 = vsub.s32 0, %v124
    %v126 = vrot.slane %v122, %v125
    %v127 = vlaneseq
    %v128 = vshrl.u32 %v127, 7
    %v129 = vsub.s32 0, %v128
    %v130 = vrot.slane %v121, %v129
    %132 = vbcast.lane.b32.xlu0 %v130, 256
    %v133 = vpop.permute.xlu0 %132
    %v134 = vlaneseq
    %v135 = vshrl.u32 %v134, 7
    %v136 = vsub.s32 1, %v135
    %v137 = vrot.slane %v121, %v136
    %139 = vbcast.lane.b32.xlu0 %v137, 256
    %v140 = vpop.permute.xlu0 %139
    %v141 = vsub.f32 %v122, %v126
    %v142 = vmul.f32 %v133, %v141
    %v143 = vmul.f32 %v140, %v141
    %v144 = vadd.f32 %v126, %v142
    %v145 = vadd.f32 %v126, %v143
    %v146 = vld [vmem:[#allocation2] sm:$0xff]
    %v147 = vld [vmem:[#allocation2 + $0x8] sm:$0xff]
    %v148 = vadd.f32 %v146, %v144
    %v149 = vadd.f32 %v147, %v145
    %v151 = vunpack.c.l.s4 1966171168
    %v152 = vunpack.c.0.s8 %v151
    %v153 = vlaneseq
    %v154 = vshrl.u32 %v153, 7
    %v155 = vsub.s32 %v152, %v154
    %v156 = vrot.slane %v120, %v155
    %v157 = vcombine.high %v156, %v156
    %v159 = vunpack.c.l.s4 1966171168
    %v160 = vunpack.c.0.s8 %v159
    %v161 = vlaneseq
    %v162 = vshrl.u32 %v161, 7
    %v163 = vsub.s32 %v160, %v162
    %v164 = vrot.slane %v156, %v163
    %v166 = vunpack.c.l.s4 1966171168
    %v167 = vunpack.c.0.s8 %v166
    %v168 = vlaneseq
    %v169 = vshrl.u32 %v168, 7
    %v170 = vsub.s32 %v167, %v169
    %v171 = vrot.slane %v157, %v170
    %vm172 = vcmp.ne.s32.totalorder %v164, 0
    %vm173 = vcmp.ne.s32.totalorder %v171, 0
    %v174 = vsel %vm172, 0.0, -1e+30
    %v175 = vsel %vm173, 0.0, -1e+30
    %v176 = vld [vmem:[#allocation7] sm:$0xff]
    %v177 = vld [vmem:[#allocation7 + $0x8] sm:$0xff]
    %v178 = vld [vmem:[#allocation7 + $0x10] sm:$0xff]
    %v179 = vld [vmem:[#allocation7 + $0x18] sm:$0xff]
    %v180 = vld [vmem:[%s4] sm:$0x1]
    %v182 = vlaneseq
    %v183 = vshrl.u32 %v182, 7
    %v184 = vsub.s32 0, %v183
    %v185 = vrot.slane %v180, %v184
    %vm187 = vcmask 261120
    %v189 = vsel %vm187, %v148, 0
    %v192 = vsel %vm187, %v149, 0
    %194 = vmatprep.subr.mxu0 0.0
    %195 = vmatpush1.msra.mxu0 %v176
    %196 = vmatprep.subr.mxu0 0.0
    %197 = vmatpush1.msra.mxu0 %v177
    %198 = vmatprep.subr.mxu0 0.0
    %199 = vmatpush1.msra.mxu0 %v178
    %200 = vmatprep.subr.mxu0 0.0
    %201 = vmatpush1.msra.mxu0 %v179
    %202 = vmatprep.subr.mxu0 0.0
    %203 = vmatpush1.msra.mxu0 0.0
    %204 = vmatprep.subr.mxu0 0.0
    %205 = vmatpush1.msra.mxu0 0.0
    %206 = vmatprep.subr.mxu0 0.0
    %207 = vmatpush1.msra.mxu0 0.0
    %208 = vmatprep.subr.mxu0 0.0
    %209 = vmatpush1.msra.mxu0 0.0
    %210 = vmatprep.subr.mxu0 0.0
    %211 = vmatpush1.msra.mxu0 0.0
    %212 = vmatprep.subr.mxu0 0.0
    %213 = vmatpush1.msra.mxu0 0.0
    %214 = vmatprep.subr.mxu0 0.0
    %215 = vmatpush1.msra.mxu0 0.0
    %216 = vmatprep.subr.mxu0 0.0
    %217 = vmatpush1.msra.mxu0 0.0
    %218 = vmatprep.subr.mxu0 0.0
    %219 = vmatpush1.msra.mxu0 0.0
    %220 = vmatprep.subr.mxu0 0.0
    %221 = vmatpush1.msra.mxu0 0.0
    %222 = vmatprep.subr.mxu0 0.0
    %223 = vmatpush1.msra.mxu0 0.0
    %224 = vmatprep.subr.mxu0 0.0
    %225 = vmatpush1.msra.mxu0 0.0
    %226 = vmatprep.subr.mxu0 0.0
    %227 = vmatpush1.msra.mxu0 0.0
    %228 = vmatprep.subr.mxu0 0.0
    %229 = vmatpush1.msra.mxu0 0.0
    %230 = vmatprep.subr.mxu0 0.0
    %231 = vmatpush1.msra.mxu0 0.0
    %232 = vmatprep.subr.mxu0 0.0
    %233 = vmatpush1.msra.mxu0 0.0
    %234 = vmatprep.subr.mxu0 0.0
    %235 = vmatpush1.msra.mxu0 0.0
    %236 = vmatprep.subr.mxu0 0.0
    %237 = vmatpush1.msra.mxu0 0.0
    %238 = vmatprep.subr.mxu0 0.0
    %239 = vmatpush1.msra.mxu0 0.0
    %240 = vmatprep.subr.mxu0 0.0
    %241 = vmatpush1.msra.mxu0 0.0
    %242 = vmatprep.subr.mxu0 0.0
    %243 = vmatpush1.msra.mxu0 0.0
    %244 = vmatprep.subr.mxu0 0.0
    %245 = vmatpush1.msra.mxu0 0.0
    %246 = vmatprep.subr.mxu0 0.0
    %247 = vmatpush1.msra.mxu0 0.0
    %248 = vmatprep.subr.mxu0 0.0
    %249 = vmatpush1.msra.mxu0 0.0
    %250 = vmatprep.subr.mxu0 0.0
    %251 = vmatpush1.msra.mxu0 0.0
    %252 = vmatprep.subr.mxu0 0.0
    %253 = vmatpush1.msra.mxu0 0.0
    %254 = vmatprep.subr.mxu0 0.0
    %255 = vmatpush1.msra.mxu0 0.0
    %256 = vmatprep.subr.mxu0 0.0
    %257 = vmatpush1.msra.mxu0 0.0
    %258 = vmatprep.mubr.f32.mxu0 0.0
    %259 = vmatmul.mubr.f32.gmra.mrb[0].mxu0 %v189
    %v260 = vpop.f32.mrb[0].mxu0
    %v261 = vadd.f32 %v185, %v260
    %v262 = vpop.f32.mrb[0].mxu0
    %263 = vmatprep.mubr.f32.mxu0 0.0
    %264 = vmatmul.mubr.f32.gmra.mrb[0].mxu0 %v192
    %v265 = vpop.f32.mrb[0].mxu0
    %v266 = vadd.f32 %v185, %v265
    %v267 = vpop.f32.mrb[0].mxu0
    %268 = vdwg.mxu0
    %271 = vrot.lane.b32.xlu0 %v261, 112
    %v272 = vpop.permute.xlu0 %271
    %273 = vrot.lane.b32.xlu0 %v266, 112
    %v274 = vpop.permute.xlu0 %273
    %275 = vrot.lane.b32.xlu0 %v261, 96
    %v276 = vpop.permute.xlu0 %275
    %vm277 = vcmask 130048
    %v278 = vsel %vm277, %v261, 0
    %v280 = vsel %vm277, %v276, 0
    %282 = vmatprep.subr.mxu0 0.0
    %283 = vmatpush1.xpose.msra.mxu0 %v280
    %284 = vmatprep.subr.mxu0 0.0
    %285 = vmatpush1.xpose.msra.mxu0 0.0
    %286 = vmatprep.subr.mxu0 0.0
    %287 = vmatpush1.xpose.msra.mxu0 0.0
    %288 = vmatprep.subr.mxu0 0.0
    %289 = vmatpush1.xpose.msra.mxu0 0.0
    %290 = vmatprep.subr.mxu0 0.0
    %291 = vmatpush1.xpose.msra.mxu0 0.0
    %292 = vmatprep.subr.mxu0 0.0
    %293 = vmatpush1.xpose.msra.mxu0 0.0
    %294 = vmatprep.subr.mxu0 0.0
    %295 = vmatpush1.xpose.msra.mxu0 0.0
    %296 = vmatprep.subr.mxu0 0.0
    %297 = vmatpush1.xpose.msra.mxu0 0.0
    %298 = vmatprep.subr.mxu0 0.0
    %299 = vmatpush1.xpose.msra.mxu0 0.0
    %300 = vmatprep.subr.mxu0 0.0
    %301 = vmatpush1.xpose.msra.mxu0 0.0
    %302 = vmatprep.subr.mxu0 0.0
    %303 = vmatpush1.xpose.msra.mxu0 0.0
    %304 = vmatprep.subr.mxu0 0.0
    %305 = vmatpush1.xpose.msra.mxu0 0.0
    %306 = vmatprep.subr.mxu0 0.0
    %307 = vmatpush1.xpose.msra.mxu0 0.0
    %308 = vmatprep.subr.mxu0 0.0
    %309 = vmatpush1.xpose.msra.mxu0 0.0
    %310 = vmatprep.subr.mxu0 0.0
    %311 = vmatpush1.xpose.msra.mxu0 0.0
    %312 = vmatprep.subr.mxu0 0.0
    %313 = vmatpush1.xpose.msra.mxu0 0.0
    %314 = vmatprep.subr.mxu0 0.0
    %315 = vmatpush1.xpose.msra.mxu0 0.0
    %316 = vmatprep.subr.mxu0 0.0
    %317 = vmatpush1.xpose.msra.mxu0 0.0
    %318 = vmatprep.subr.mxu0 0.0
    %319 = vmatpush1.xpose.msra.mxu0 0.0
    %320 = vmatprep.subr.mxu0 0.0
    %321 = vmatpush1.xpose.msra.mxu0 0.0
    %322 = vmatprep.subr.mxu0 0.0
    %323 = vmatpush1.xpose.msra.mxu0 0.0
    %324 = vmatprep.subr.mxu0 0.0
    %325 = vmatpush1.xpose.msra.mxu0 0.0
    %326 = vmatprep.subr.mxu0 0.0
    %327 = vmatpush1.xpose.msra.mxu0 0.0
    %328 = vmatprep.subr.mxu0 0.0
    %329 = vmatpush1.xpose.msra.mxu0 0.0
    %330 = vmatprep.subr.mxu0 0.0
    %331 = vmatpush1.xpose.msra.mxu0 0.0
    %332 = vmatprep.subr.mxu0 0.0
    %333 = vmatpush1.xpose.msra.mxu0 0.0
    %334 = vmatprep.subr.mxu0 0.0
    %335 = vmatpush1.xpose.msra.mxu0 0.0
    %336 = vmatprep.subr.mxu0 0.0
    %337 = vmatpush1.xpose.msra.mxu0 0.0
    %338 = vmatprep.subr.mxu0 0.0
    %339 = vmatpush1.xpose.msra.mxu0 0.0
    %340 = vmatprep.subr.mxu0 0.0
    %341 = vmatpush1.xpose.msra.mxu0 0.0
    %342 = vmatprep.subr.mxu0 0.0
    %343 = vmatpush1.xpose.msra.mxu0 0.0
    %344 = vmatprep.subr.mxu0 0.0
    %345 = vmatpush1.xpose.msra.mxu0 0.0
    %346 = vmatprep.mubr.f32.mxu0 0.0
    %347 = vmatmul.mubr.f32.gmra.mrb[0].mxu0 %v278
    %v348 = vpop.f32.mrb[0].mxu0
    %v349 = vadd.f32 0.0, %v348
    %v350 = vpop.f32.mrb[0].mxu0
    %351 = vdwg.mxu0
    %352 = vrot.lane.b32.xlu0 %v266, 96
    %v353 = vpop.permute.xlu0 %352
    %v354 = vsel %vm277, %v266, 0
    %v356 = vsel %vm277, %v353, 0
    %358 = vmatprep.subr.mxu0 0.0
    %359 = vmatpush1.xpose.msra.mxu0 %v356
    %360 = vmatprep.subr.mxu0 0.0
    %361 = vmatpush1.xpose.msra.mxu0 0.0
    %362 = vmatprep.subr.mxu0 0.0
    %363 = vmatpush1.xpose.msra.mxu0 0.0
    %364 = vmatprep.subr.mxu0 0.0
    %365 = vmatpush1.xpose.msra.mxu0 0.0
    %366 = vmatprep.subr.mxu0 0.0
    %367 = vmatpush1.xpose.msra.mxu0 0.0
    %368 = vmatprep.subr.mxu0 0.0
    %369 = vmatpush1.xpose.msra.mxu0 0.0
    %370 = vmatprep.subr.mxu0 0.0
    %371 = vmatpush1.xpose.msra.mxu0 0.0
    %372 = vmatprep.subr.mxu0 0.0
    %373 = vmatpush1.xpose.msra.mxu0 0.0
    %374 = vmatprep.subr.mxu0 0.0
    %375 = vmatpush1.xpose.msra.mxu0 0.0
    %376 = vmatprep.subr.mxu0 0.0
    %377 = vmatpush1.xpose.msra.mxu0 0.0
    %378 = vmatprep.subr.mxu0 0.0
    %379 = vmatpush1.xpose.msra.mxu0 0.0
    %380 = vmatprep.subr.mxu0 0.0
    %381 = vmatpush1.xpose.msra.mxu0 0.0
    %382 = vmatprep.subr.mxu0 0.0
    %383 = vmatpush1.xpose.msra.mxu0 0.0
    %384 = vmatprep.subr.mxu0 0.0
    %385 = vmatpush1.xpose.msra.mxu0 0.0
    %386 = vmatprep.subr.mxu0 0.0
    %387 = vmatpush1.xpose.msra.mxu0 0.0
    %388 = vmatprep.subr.mxu0 0.0
    %389 = vmatpush1.xpose.msra.mxu0 0.0
    %390 = vmatprep.subr.mxu0 0.0
    %391 = vmatpush1.xpose.msra.mxu0 0.0
    %392 = vmatprep.subr.mxu0 0.0
    %393 = vmatpush1.xpose.msra.mxu0 0.0
    %394 = vmatprep.subr.mxu0 0.0
    %395 = vmatpush1.xpose.msra.mxu0 0.0
    %396 = vmatprep.subr.mxu0 0.0
    %397 = vmatpush1.xpose.msra.mxu0 0.0
    %398 = vmatprep.subr.mxu0 0.0
    %399 = vmatpush1.xpose.msra.mxu0 0.0
    %400 = vmatprep.subr.mxu0 0.0
    %401 = vmatpush1.xpose.msra.mxu0 0.0
    %402 = vmatprep.subr.mxu0 0.0
    %403 = vmatpush1.xpose.msra.mxu0 0.0
    %404 = vmatprep.subr.mxu0 0.0
    %405 = vmatpush1.xpose.msra.mxu0 0.0
    %406 = vmatprep.subr.mxu0 0.0
    %407 = vmatpush1.xpose.msra.mxu0 0.0
    %408 = vmatprep.subr.mxu0 0.0
    %409 = vmatpush1.xpose.msra.mxu0 0.0
    %410 = vmatprep.subr.mxu0 0.0
    %411 = vmatpush1.xpose.msra.mxu0 0.0
    %412 = vmatprep.subr.mxu0 0.0
    %413 = vmatpush1.xpose.msra.mxu0 0.0
    %414 = vmatprep.subr.mxu0 0.0
    %415 = vmatpush1.xpose.msra.mxu0 0.0
    %416 = vmatprep.subr.mxu0 0.0
    %417 = vmatpush1.xpose.msra.mxu0 0.0
    %418 = vmatprep.subr.mxu0 0.0
    %419 = vmatpush1.xpose.msra.mxu0 0.0
    %420 = vmatprep.subr.mxu0 0.0
    %421 = vmatpush1.xpose.msra.mxu0 0.0
    %422 = vmatprep.mubr.f32.mxu0 0.0
    %423 = vmatmul.mubr.f32.gmra.mrb[0].mxu0 %v354
    %v424 = vpop.f32.mrb[0].mxu0
    %v425 = vadd.f32 0.0, %v424
    %v426 = vpop.f32.mrb[0].mxu0
    %427 = vdwg.mxu0
    %428 = vrot.lane.b32.xlu0 %v272, 96
    %v429 = vpop.permute.xlu0 %428
    %v430 = vsel %vm277, %v272, 0
    %v432 = vsel %vm277, %v429, 0
    %434 = vmatprep.subr.mxu0 0.0
    %435 = vmatpush1.xpose.msra.mxu0 %v432
    %436 = vmatprep.subr.mxu0 0.0
    %437 = vmatpush1.xpose.msra.mxu0 0.0
    %438 = vmatprep.subr.mxu0 0.0
    %439 = vmatpush1.xpose.msra.mxu0 0.0
    %440 = vmatprep.subr.mxu0 0.0
    %441 = vmatpush1.xpose.msra.mxu0 0.0
    %442 = vmatprep.subr.mxu0 0.0
    %443 = vmatpush1.xpose.msra.mxu0 0.0
    %444 = vmatprep.subr.mxu0 0.0
    %445 = vmatpush1.xpose.msra.mxu0 0.0
    %446 = vmatprep.subr.mxu0 0.0
    %447 = vmatpush1.xpose.msra.mxu0 0.0
    %448 = vmatprep.subr.mxu0 0.0
    %449 = vmatpush1.xpose.msra.mxu0 0.0
    %450 = vmatprep.subr.mxu0 0.0
    %451 = vmatpush1.xpose.msra.mxu0 0.0
    %452 = vmatprep.subr.mxu0 0.0
    %453 = vmatpush1.xpose.msra.mxu0 0.0
    %454 = vmatprep.subr.mxu0 0.0
    %455 = vmatpush1.xpose.msra.mxu0 0.0
    %456 = vmatprep.subr.mxu0 0.0
    %457 = vmatpush1.xpose.msra.mxu0 0.0
    %458 = vmatprep.subr.mxu0 0.0
    %459 = vmatpush1.xpose.msra.mxu0 0.0
    %460 = vmatprep.subr.mxu0 0.0
    %461 = vmatpush1.xpose.msra.mxu0 0.0
    %462 = vmatprep.subr.mxu0 0.0
    %463 = vmatpush1.xpose.msra.mxu0 0.0
    %464 = vmatprep.subr.mxu0 0.0
    %465 = vmatpush1.xpose.msra.mxu0 0.0
    %466 = vmatprep.subr.mxu0 0.0
    %467 = vmatpush1.xpose.msra.mxu0 0.0
    %468 = vmatprep.subr.mxu0 0.0
    %469 = vmatpush1.xpose.msra.mxu0 0.0
    %470 = vmatprep.subr.mxu0 0.0
    %471 = vmatpush1.xpose.msra.mxu0 0.0
    %472 = vmatprep.subr.mxu0 0.0
    %473 = vmatpush1.xpose.msra.mxu0 0.0
    %474 = vmatprep.subr.mxu0 0.0
    %475 = vmatpush1.xpose.msra.mxu0 0.0
    %476 = vmatprep.subr.mxu0 0.0
    %477 = vmatpush1.xpose.msra.mxu0 0.0
    %478 = vmatprep.subr.mxu0 0.0
    %479 = vmatpush1.xpose.msra.mxu0 0.0
    %480 = vmatprep.subr.mxu0 0.0
    %481 = vmatpush1.xpose.msra.mxu0 0.0
    %482 = vmatprep.subr.mxu0 0.0
    %483 = vmatpush1.xpose.msra.mxu0 0.0
    %484 = vmatprep.subr.mxu0 0.0
    %485 = vmatpush1.xpose.msra.mxu0 0.0
    %486 = vmatprep.subr.mxu0 0.0
    %487 = vmatpush1.xpose.msra.mxu0 0.0
    %488 = vmatprep.subr.mxu0 0.0
    %489 = vmatpush1.xpose.msra.mxu0 0.0
    %490 = vmatprep.subr.mxu0 0.0
    %491 = vmatpush1.xpose.msra.mxu0 0.0
    %492 = vmatprep.subr.mxu0 0.0
    %493 = vmatpush1.xpose.msra.mxu0 0.0
    %494 = vmatprep.subr.mxu0 0.0
    %495 = vmatpush1.xpose.msra.mxu0 0.0
    %496 = vmatprep.subr.mxu0 0.0
    %497 = vmatpush1.xpose.msra.mxu0 0.0
    %498 = vmatprep.mubr.f32.mxu0 0.0
    %499 = vmatmul.mubr.f32.gmra.mrb[0].mxu0 %v430
    %v500 = vpop.f32.mrb[0].mxu0
    %v501 = vadd.f32 0.0, %v500
    %v502 = vpop.f32.mrb[0].mxu0
    %503 = vdwg.mxu0
    %504 = vrot.lane.b32.xlu0 %v274, 96
    %v505 = vpop.permute.xlu0 %504
    %v506 = vsel %vm277, %v274, 0
    %v508 = vsel %vm277, %v505, 0
    %510 = vmatprep.subr.mxu0 0.0
    %511 = vmatpush1.xpose.msra.mxu0 %v508
    %512 = vmatprep.subr.mxu0 0.0
    %513 = vmatpush1.xpose.msra.mxu0 0.0
    %514 = vmatprep.subr.mxu0 0.0
    %515 = vmatpush1.xpose.msra.mxu0 0.0
    %516 = vmatprep.subr.mxu0 0.0
    %517 = vmatpush1.xpose.msra.mxu0 0.0
    %518 = vmatprep.subr.mxu0 0.0
    %519 = vmatpush1.xpose.msra.mxu0 0.0
    %520 = vmatprep.subr.mxu0 0.0
    %521 = vmatpush1.xpose.msra.mxu0 0.0
    %522 = vmatprep.subr.mxu0 0.0
    %523 = vmatpush1.xpose.msra.mxu0 0.0
    %524 = vmatprep.subr.mxu0 0.0
    %525 = vmatpush1.xpose.msra.mxu0 0.0
    %526 = vmatprep.subr.mxu0 0.0
    %527 = vmatpush1.xpose.msra.mxu0 0.0
    %528 = vmatprep.subr.mxu0 0.0
    %529 = vmatpush1.xpose.msra.mxu0 0.0
    %530 = vmatprep.subr.mxu0 0.0
    %531 = vmatpush1.xpose.msra.mxu0 0.0
    %532 = vmatprep.subr.mxu0 0.0
    %533 = vmatpush1.xpose.msra.mxu0 0.0
    %534 = vmatprep.subr.mxu0 0.0
    %535 = vmatpush1.xpose.msra.mxu0 0.0
    %536 = vmatprep.subr.mxu0 0.0
    %537 = vmatpush1.xpose.msra.mxu0 0.0
    %538 = vmatprep.subr.mxu0 0.0
    %539 = vmatpush1.xpose.msra.mxu0 0.0
    %540 = vmatprep.subr.mxu0 0.0
    %541 = vmatpush1.xpose.msra.mxu0 0.0
    %542 = vmatprep.subr.mxu0 0.0
    %543 = vmatpush1.xpose.msra.mxu0 0.0
    %544 = vmatprep.subr.mxu0 0.0
    %545 = vmatpush1.xpose.msra.mxu0 0.0
    %546 = vmatprep.subr.mxu0 0.0
    %547 = vmatpush1.xpose.msra.mxu0 0.0
    %548 = vmatprep.subr.mxu0 0.0
    %549 = vmatpush1.xpose.msra.mxu0 0.0
    %550 = vmatprep.subr.mxu0 0.0
    %551 = vmatpush1.xpose.msra.mxu0 0.0
    %552 = vmatprep.subr.mxu0 0.0
    %553 = vmatpush1.xpose.msra.mxu0 0.0
    %554 = vmatprep.subr.mxu0 0.0
    %555 = vmatpush1.xpose.msra.mxu0 0.0
    %556 = vmatprep.subr.mxu0 0.0
    %557 = vmatpush1.xpose.msra.mxu0 0.0
    %558 = vmatprep.subr.mxu0 0.0
    %559 = vmatpush1.xpose.msra.mxu0 0.0
    %560 = vmatprep.subr.mxu0 0.0
    %561 = vmatpush1.xpose.msra.mxu0 0.0
    %562 = vmatprep.subr.mxu0 0.0
    %563 = vmatpush1.xpose.msra.mxu0 0.0
    %564 = vmatprep.subr.mxu0 0.0
    %565 = vmatpush1.xpose.msra.mxu0 0.0
    %566 = vmatprep.subr.mxu0 0.0
    %567 = vmatpush1.xpose.msra.mxu0 0.0
    %568 = vmatprep.subr.mxu0 0.0
    %569 = vmatpush1.xpose.msra.mxu0 0.0
    %570 = vmatprep.subr.mxu0 0.0
    %571 = vmatpush1.xpose.msra.mxu0 0.0
    %572 = vmatprep.subr.mxu0 0.0
    %573 = vmatpush1.xpose.msra.mxu0 0.0
    %574 = vmatprep.mubr.f32.mxu0 0.0
    %575 = vmatmul.mubr.f32.gmra.mrb[0].mxu0 %v506
    %v576 = vpop.f32.mrb[0].mxu0
    %v577 = vadd.f32 0.0, %v576
    %v578 = vpop.f32.mrb[0].mxu0
    %579 = vdwg.mxu0
    %v580 = vmul.f32 %v349, 0.25
    %v581 = vmul.f32 %v425, 0.25
    %v582 = vmul.f32 %v501, 0.25
    %v583 = vmul.f32 %v577, 0.25
    %v586 = vlaneseq
    %v587 = vshrl.u32 %v586, 7
    %v588 = vsub.s32 0, %v587
    %v589 = vrot.slane %v174, %v588
    %v590 = vlaneseq
    %v591 = vshrl.u32 %v590, 7
    %v592 = vsub.s32 0, %v591
    %v593 = vrot.slane %v175, %v592
    %v596 = vadd.f32 %v580, %v589
    %v597 = vadd.f32 %v581, %v593
    %v598 = vadd.f32 %v582, %v589
    %v599 = vadd.f32 %v583, %v593
    %vm600 = vcmask 64512
    %v601 = vsel %vm600, %v596, -inf
    %v602 = vsel %vm600, %v597, -inf
    %v603 = vsel %vm600, %v598, -inf
    %v604 = vsel %vm600, %v599, -inf
    %v605 = vmax.f32 %v601, %v602
    %v606 = vmax.f32 %v603, %v604
    %v607 = vmax.f32 %v605, %v606
    %608 = vmax.xlane.f32.xlu0 %v607
    %v609 = vpop.xlane.xlu0 %608
    %v610 = vrot.slane %v609, 4
    %v611 = vmax.f32 %v609, %v610
    %v612 = vrot.slane %v611, 2
    %v613 = vmax.f32 %v611, %v612
    %v614 = vrot.slane %v613, 1
    %v615 = vmax.f32 %v613, %v614
    %s616 = vtos %v615
    %v617 = vstv %s616
    %v618 = vsub.f32 %v596, %v617
    %v619 = vsub.f32 %v597, %v617
    %v620 = vsub.f32 %v598, %v617
    %v621 = vsub.f32 %v599, %v617
    %v622 = vmul.f32 %v618, 1.442695
    %v623 = vpow.pop %v622
    %v624 = vmul.f32 %v619, 1.442695
    %v625 = vpow.pop %v624
    %v626 = vmul.f32 %v620, 1.442695
    %v627 = vpow.pop %v626
    %v628 = vmul.f32 %v621, 1.442695
    %v629 = vpow.pop %v628
    %v630 = vsel %vm600, %v623, 0.0
    %631 = vadd.xlane.f32.xlu0 %v630
    %v632 = vpop.xlane.xlu0 %631
    %v633 = vsel %vm600, %v625, 0.0
    %634 = vadd.xlane.f32.xlu0 %v633
    %v635 = vpop.xlane.xlu0 %634
    %v636 = vsel %vm600, %v627, 0.0
    %637 = vadd.xlane.f32.xlu0 %v636
    %v638 = vpop.xlane.xlu0 %637
    %v639 = vsel %vm600, %v629, 0.0
    %640 = vadd.xlane.f32.xlu0 %v639
    %v641 = vpop.xlane.xlu0 %640
    %vm642 = vcmp.eq.f32.partialorder %v632, 0.0
    %vm643 = vcmp.eq.f32.partialorder %v635, 0.0
    %vm644 = vcmp.eq.f32.partialorder %v638, 0.0
    %vm645 = vcmp.eq.f32.partialorder %v641, 0.0
    %v646 = vsel %vm642, 1.0, %v632
    %v647 = vsel %vm643, 1.0, %v635
    %v648 = vsel %vm644, 1.0, %v638
    %v649 = vsel %vm645, 1.0, %v641
    %v650 = vrcp.pop %v646
    %v651 = vmul.f32 %v623, %v650
    %v652 = vrcp.pop %v647
    %v653 = vmul.f32 %v625, %v652
    %v654 = vrcp.pop %v648
    %v655 = vmul.f32 %v627, %v654
    %v656 = vrcp.pop %v649
    %v657 = vmul.f32 %v629, %v656
    %658 = vrot.lane.b32.xlu0 %v261, 64
    %v659 = vpop.permute.xlu0 %658
    %v662 = vsel %vm600, %v651, 0
    %664 = vmatprep.subr.mxu0 0.0
    %665 = vmatpush1.msra.mxu0 %v659
    %666 = vmatprep.subr.mxu0 0.0
    %667 = vmatpush1.msra.mxu0 0.0
    %668 = vmatprep.subr.mxu0 0.0
    %669 = vmatpush1.msra.mxu0 0.0
    %670 = vmatprep.subr.mxu0 0.0
    %671 = vmatpush1.msra.mxu0 0.0
    %672 = vmatprep.subr.mxu0 0.0
    %673 = vmatpush1.msra.mxu0 0.0
    %674 = vmatprep.subr.mxu0 0.0
    %675 = vmatpush1.msra.mxu0 0.0
    %676 = vmatprep.subr.mxu0 0.0
    %677 = vmatpush1.msra.mxu0 0.0
    %678 = vmatprep.subr.mxu0 0.0
    %679 = vmatpush1.msra.mxu0 0.0
    %680 = vmatprep.subr.mxu0 0.0
    %681 = vmatpush1.msra.mxu0 0.0
    %682 = vmatprep.subr.mxu0 0.0
    %683 = vmatpush1.msra.mxu0 0.0
    %684 = vmatprep.subr.mxu0 0.0
    %685 = vmatpush1.msra.mxu0 0.0
    %686 = vmatprep.subr.mxu0 0.0
    %687 = vmatpush1.msra.mxu0 0.0
    %688 = vmatprep.subr.mxu0 0.0
    %689 = vmatpush1.msra.mxu0 0.0
    %690 = vmatprep.subr.mxu0 0.0
    %691 = vmatpush1.msra.mxu0 0.0
    %692 = vmatprep.subr.mxu0 0.0
    %693 = vmatpush1.msra.mxu0 0.0
    %694 = vmatprep.subr.mxu0 0.0
    %695 = vmatpush1.msra.mxu0 0.0
    %696 = vmatprep.subr.mxu0 0.0
    %697 = vmatpush1.msra.mxu0 0.0
    %698 = vmatprep.subr.mxu0 0.0
    %699 = vmatpush1.msra.mxu0 0.0
    %700 = vmatprep.subr.mxu0 0.0
    %701 = vmatpush1.msra.mxu0 0.0
    %702 = vmatprep.subr.mxu0 0.0
    %703 = vmatpush1.msra.mxu0 0.0
    %704 = vmatprep.subr.mxu0 0.0
    %705 = vmatpush1.msra.mxu0 0.0
    %706 = vmatprep.subr.mxu0 0.0
    %707 = vmatpush1.msra.mxu0 0.0
    %708 = vmatprep.subr.mxu0 0.0
    %709 = vmatpush1.msra.mxu0 0.0
    %710 = vmatprep.subr.mxu0 0.0
    %711 = vmatpush1.msra.mxu0 0.0
    %712 = vmatprep.subr.mxu0 0.0
    %713 = vmatpush1.msra.mxu0 0.0
    %714 = vmatprep.subr.mxu0 0.0
    %715 = vmatpush1.msra.mxu0 0.0
    %716 = vmatprep.subr.mxu0 0.0
    %717 = vmatpush1.msra.mxu0 0.0
    %718 = vmatprep.subr.mxu0 0.0
    %719 = vmatpush1.msra.mxu0 0.0
    %720 = vmatprep.subr.mxu0 0.0
    %721 = vmatpush1.msra.mxu0 0.0
    %722 = vmatprep.subr.mxu0 0.0
    %723 = vmatpush1.msra.mxu0 0.0
    %724 = vmatprep.subr.mxu0 0.0
    %725 = vmatpush1.msra.mxu0 0.0
    %726 = vmatprep.subr.mxu0 0.0
    %727 = vmatpush1.msra.mxu0 0.0
    %728 = vmatprep.mubr.f32.mxu0 0.0
    %729 = vmatmul.mubr.f32.gmra.mrb[0].mxu0 %v662
    %v730 = vpop.f32.mrb[0].mxu0
    %v731 = vadd.f32 0.0, %v730
    %v732 = vpop.f32.mrb[0].mxu0
    %733 = vdwg.mxu0
    %734 = vrot.lane.b32.xlu0 %v266, 64
    %v735 = vpop.permute.xlu0 %734
    %v738 = vsel %vm600, %v653, 0
    %740 = vmatprep.subr.mxu0 0.0
    %741 = vmatpush1.msra.mxu0 %v735
    %742 = vmatprep.subr.mxu0 0.0
    %743 = vmatpush1.msra.mxu0 0.0
    %744 = vmatprep.subr.mxu0 0.0
    %745 = vmatpush1.msra.mxu0 0.0
    %746 = vmatprep.subr.mxu0 0.0
    %747 = vmatpush1.msra.mxu0 0.0
    %748 = vmatprep.subr.mxu0 0.0
    %749 = vmatpush1.msra.mxu0 0.0
    %750 = vmatprep.subr.mxu0 0.0
    %751 = vmatpush1.msra.mxu0 0.0
    %752 = vmatprep.subr.mxu0 0.0
    %753 = vmatpush1.msra.mxu0 0.0
    %754 = vmatprep.subr.mxu0 0.0
    %755 = vmatpush1.msra.mxu0 0.0
    %756 = vmatprep.subr.mxu0 0.0
    %757 = vmatpush1.msra.mxu0 0.0
    %758 = vmatprep.subr.mxu0 0.0
    %759 = vmatpush1.msra.mxu0 0.0
    %760 = vmatprep.subr.mxu0 0.0
    %761 = vmatpush1.msra.mxu0 0.0
    %762 = vmatprep.subr.mxu0 0.0
    %763 = vmatpush1.msra.mxu0 0.0
    %764 = vmatprep.subr.mxu0 0.0
    %765 = vmatpush1.msra.mxu0 0.0
    %766 = vmatprep.subr.mxu0 0.0
    %767 = vmatpush1.msra.mxu0 0.0
    %768 = vmatprep.subr.mxu0 0.0
    %769 = vmatpush1.msra.mxu0 0.0
    %770 = vmatprep.subr.mxu0 0.0
    %771 = vmatpush1.msra.mxu0 0.0
    %772 = vmatprep.subr.mxu0 0.0
    %773 = vmatpush1.msra.mxu0 0.0
    %774 = vmatprep.subr.mxu0 0.0
    %775 = vmatpush1.msra.mxu0 0.0
    %776 = vmatprep.subr.mxu0 0.0
    %777 = vmatpush1.msra.mxu0 0.0
    %778 = vmatprep.subr.mxu0 0.0
    %779 = vmatpush1.msra.mxu0 0.0
    %780 = vmatprep.subr.mxu0 0.0
    %781 = vmatpush1.msra.mxu0 0.0
    %782 = vmatprep.subr.mxu0 0.0
    %783 = vmatpush1.msra.mxu0 0.0
    %784 = vmatprep.subr.mxu0 0.0
    %785 = vmatpush1.msra.mxu0 0.0
    %786 = vmatprep.subr.mxu0 0.0
    %787 = vmatpush1.msra.mxu0 0.0
    %788 = vmatprep.subr.mxu0 0.0
    %789 = vmatpush1.msra.mxu0 0.0
    %790 = vmatprep.subr.mxu0 0.0
    %791 = vmatpush1.msra.mxu0 0.0
    %792 = vmatprep.subr.mxu0 0.0
    %793 = vmatpush1.msra.mxu0 0.0
    %794 = vmatprep.subr.mxu0 0.0
    %795 = vmatpush1.msra.mxu0 0.0
    %796 = vmatprep.subr.mxu0 0.0
    %797 = vmatpush1.msra.mxu0 0.0
    %798 = vmatprep.subr.mxu0 0.0
    %799 = vmatpush1.msra.mxu0 0.0
    %800 = vmatprep.subr.mxu0 0.0
    %801 = vmatpush1.msra.mxu0 0.0
    %802 = vmatprep.subr.mxu0 0.0
    %803 = vmatpush1.msra.mxu0 0.0
    %804 = vmatprep.mubr.f32.mxu0 0.0
    %805 = vmatmul.mubr.f32.gmra.mrb[0].mxu0 %v738
    %v806 = vpop.f32.mrb[0].mxu0
    %v807 = vadd.f32 0.0, %v806
    %v808 = vpop.f32.mrb[0].mxu0
    %809 = vdwg.mxu0
    %810 = vrot.lane.b32.xlu0 %v272, 64
    %v811 = vpop.permute.xlu0 %810
    %v814 = vsel %vm600, %v655, 0
    %816 = vmatprep.subr.mxu0 0.0
    %817 = vmatpush1.msra.mxu0 %v811
    %818 = vmatprep.subr.mxu0 0.0
    %819 = vmatpush1.msra.mxu0 0.0
    %820 = vmatprep.subr.mxu0 0.0
    %821 = vmatpush1.msra.mxu0 0.0
    %822 = vmatprep.subr.mxu0 0.0
    %823 = vmatpush1.msra.mxu0 0.0
    %824 = vmatprep.subr.mxu0 0.0
    %825 = vmatpush1.msra.mxu0 0.0
    %826 = vmatprep.subr.mxu0 0.0
    %827 = vmatpush1.msra.mxu0 0.0
    %828 = vmatprep.subr.mxu0 0.0
    %829 = vmatpush1.msra.mxu0 0.0
    %830 = vmatprep.subr.mxu0 0.0
    %831 = vmatpush1.msra.mxu0 0.0
    %832 = vmatprep.subr.mxu0 0.0
    %833 = vmatpush1.msra.mxu0 0.0
    %834 = vmatprep.subr.mxu0 0.0
    %835 = vmatpush1.msra.mxu0 0.0
    %836 = vmatprep.subr.mxu0 0.0
    %837 = vmatpush1.msra.mxu0 0.0
    %838 = vmatprep.subr.mxu0 0.0
    %839 = vmatpush1.msra.mxu0 0.0
    %840 = vmatprep.subr.mxu0 0.0
    %841 = vmatpush1.msra.mxu0 0.0
    %842 = vmatprep.subr.mxu0 0.0
    %843 = vmatpush1.msra.mxu0 0.0
    %844 = vmatprep.subr.mxu0 0.0
    %845 = vmatpush1.msra.mxu0 0.0
    %846 = vmatprep.subr.mxu0 0.0
    %847 = vmatpush1.msra.mxu0 0.0
    %848 = vmatprep.subr.mxu0 0.0
    %849 = vmatpush1.msra.mxu0 0.0
    %850 = vmatprep.subr.mxu0 0.0
    %851 = vmatpush1.msra.mxu0 0.0
    %852 = vmatprep.subr.mxu0 0.0
    %853 = vmatpush1.msra.mxu0 0.0
    %854 = vmatprep.subr.mxu0 0.0
    %855 = vmatpush1.msra.mxu0 0.0
    %856 = vmatprep.subr.mxu0 0.0
    %857 = vmatpush1.msra.mxu0 0.0
    %858 = vmatprep.subr.mxu0 0.0
    %859 = vmatpush1.msra.mxu0 0.0
    %860 = vmatprep.subr.mxu0 0.0
    %861 = vmatpush1.msra.mxu0 0.0
    %862 = vmatprep.subr.mxu0 0.0
    %863 = vmatpush1.msra.mxu0 0.0
    %864 = vmatprep.subr.mxu0 0.0
    %865 = vmatpush1.msra.mxu0 0.0
    %866 = vmatprep.subr.mxu0 0.0
    %867 = vmatpush1.msra.mxu0 0.0
    %868 = vmatprep.subr.mxu0 0.0
    %869 = vmatpush1.msra.mxu0 0.0
    %870 = vmatprep.subr.mxu0 0.0
    %871 = vmatpush1.msra.mxu0 0.0
    %872 = vmatprep.subr.mxu0 0.0
    %873 = vmatpush1.msra.mxu0 0.0
    %874 = vmatprep.subr.mxu0 0.0
    %875 = vmatpush1.msra.mxu0 0.0
    %876 = vmatprep.subr.mxu0 0.0
    %877 = vmatpush1.msra.mxu0 0.0
    %878 = vmatprep.subr.mxu0 0.0
    %879 = vmatpush1.msra.mxu0 0.0
    %880 = vmatprep.mubr.f32.mxu0 0.0
    %881 = vmatmul.mubr.f32.gmra.mrb[0].mxu0 %v814
    %v882 = vpop.f32.mrb[0].mxu0
    %v883 = vadd.f32 0.0, %v882
    %v884 = vpop.f32.mrb[0].mxu0
    %885 = vdwg.mxu0
    %886 = vrot.lane.b32.xlu0 %v274, 64
    %v887 = vpop.permute.xlu0 %886
    %v890 = vsel %vm600, %v657, 0
    %892 = vmatprep.subr.mxu0 0.0
    %893 = vmatpush1.msra.mxu0 %v887
    %894 = vmatprep.subr.mxu0 0.0
    %895 = vmatpush1.msra.mxu0 0.0
    %896 = vmatprep.subr.mxu0 0.0
    %897 = vmatpush1.msra.mxu0 0.0
    %898 = vmatprep.subr.mxu0 0.0
    %899 = vmatpush1.msra.mxu0 0.0
    %900 = vmatprep.subr.mxu0 0.0
    %901 = vmatpush1.msra.mxu0 0.0
    %902 = vmatprep.subr.mxu0 0.0
    %903 = vmatpush1.msra.mxu0 0.0
    %904 = vmatprep.subr.mxu0 0.0
    %905 = vmatpush1.msra.mxu0 0.0
    %906 = vmatprep.subr.mxu0 0.0
    %907 = vmatpush1.msra.mxu0 0.0
    %908 = vmatprep.subr.mxu0 0.0
    %909 = vmatpush1.msra.mxu0 0.0
    %910 = vmatprep.subr.mxu0 0.0
    %911 = vmatpush1.msra.mxu0 0.0
    %912 = vmatprep.subr.mxu0 0.0
    %913 = vmatpush1.msra.mxu0 0.0
    %914 = vmatprep.subr.mxu0 0.0
    %915 = vmatpush1.msra.mxu0 0.0
    %916 = vmatprep.subr.mxu0 0.0
    %917 = vmatpush1.msra.mxu0 0.0
    %918 = vmatprep.subr.mxu0 0.0
    %919 = vmatpush1.msra.mxu0 0.0
    %920 = vmatprep.subr.mxu0 0.0
    %921 = vmatpush1.msra.mxu0 0.0
    %922 = vmatprep.subr.mxu0 0.0
    %923 = vmatpush1.msra.mxu0 0.0
    %924 = vmatprep.subr.mxu0 0.0
    %925 = vmatpush1.msra.mxu0 0.0
    %926 = vmatprep.subr.mxu0 0.0
    %927 = vmatpush1.msra.mxu0 0.0
    %928 = vmatprep.subr.mxu0 0.0
    %929 = vmatpush1.msra.mxu0 0.0
    %930 = vmatprep.subr.mxu0 0.0
    %931 = vmatpush1.msra.mxu0 0.0
    %932 = vmatprep.subr.mxu0 0.0
    %933 = vmatpush1.msra.mxu0 0.0
    %934 = vmatprep.subr.mxu0 0.0
    %935 = vmatpush1.msra.mxu0 0.0
    %936 = vmatprep.subr.mxu0 0.0
    %937 = vmatpush1.msra.mxu0 0.0
    %938 = vmatprep.subr.mxu0 0.0
    %939 = vmatpush1.msra.mxu0 0.0
    %940 = vmatprep.subr.mxu0 0.0
    %941 = vmatpush1.msra.mxu0 0.0
    %942 = vmatprep.subr.mxu0 0.0
    %943 = vmatpush1.msra.mxu0 0.0
    %944 = vmatprep.subr.mxu0 0.0
    %945 = vmatpush1.msra.mxu0 0.0
    %946 = vmatprep.subr.mxu0 0.0
    %947 = vmatpush1.msra.mxu0 0.0
    %948 = vmatprep.subr.mxu0 0.0
    %949 = vmatpush1.msra.mxu0 0.0
    %950 = vmatprep.subr.mxu0 0.0
    %951 = vmatpush1.msra.mxu0 0.0
    %952 = vmatprep.subr.mxu0 0.0
    %953 = vmatpush1.msra.mxu0 0.0
    %954 = vmatprep.subr.mxu0 0.0
    %955 = vmatpush1.msra.mxu0 0.0
    %956 = vmatprep.mubr.f32.mxu0 0.0
    %957 = vmatmul.mubr.f32.gmra.mrb[0].mxu0 %v890
    %v958 = vpop.f32.mrb[0].mxu0
    %v959 = vadd.f32 0.0, %v958
    %v960 = vpop.f32.mrb[0].mxu0
    %961 = vdwg.mxu0
    %964 = vrot.lane.b32.xlu0 %v883, 16
    %v965 = vpop.permute.xlu0 %964
    %966 = vrot.lane.b32.xlu0 %v959, 16
    %v967 = vpop.permute.xlu0 %966
    %v970 = vsel %vm277, %v731, %v965
    %v971 = vsel %vm277, %v807, %v967
    %v972 = vadd.f32 %v970, %v148
    %v973 = vadd.f32 %v971, %v149
    %v974 = vld [vmem:[%s5] sm:$0x1]
    %v975 = vld [vmem:[%s6] sm:$0x1]
    %v976 = vsel %vm187, %v972, 0.0
    %977 = vadd.xlane.f32.xlu0 %v976
    %v978 = vpop.xlane.xlu0 %977
    %v979 = vsel %vm187, %v973, 0.0
    %980 = vadd.xlane.f32.xlu0 %v979
    %v981 = vpop.xlane.xlu0 %980
    %v982 = vrcp.pop 32.0
    %v983 = vmul.f32 %v978, %v982
    %v984 = vmul.f32 %v981, %v982
    %v985 = vsub.f32 %v972, %v983
    %v986 = vsub.f32 %v973, %v984
    %v987 = vmul.f32 %v985, %v985
    %v988 = vmul.f32 %v986, %v986
    %v989 = vsel %vm187, %v987, 0.0
    %990 = vadd.xlane.f32.xlu0 %v989
    %v991 = vpop.xlane.xlu0 %990
    %v992 = vsel %vm187, %v988, 0.0
    %993 = vadd.xlane.f32.xlu0 %v992
    %v994 = vpop.xlane.xlu0 %993
    %v995 = vmul.f32 %v991, %v982
    %v996 = vmul.f32 %v994, %v982
    %v997 = vadd.f32 %v995, 1e-05
    %v998 = vadd.f32 %v996, 1e-05
    %v999 = vrsqrt.pop %v997
    %v1000 = vrsqrt.pop %v998
    %v1001 = vmul.f32 %v985, %v999
    %v1002 = vmul.f32 %v986, %v1000
    %v1004 = vlaneseq
    %v1005 = vshrl.u32 %v1004, 7
    %v1006 = vsub.s32 0, %v1005
    %v1007 = vrot.slane %v974, %v1006
    %v1009 = vmul.f32 %v1001, %v1007
    %v1010 = vmul.f32 %v1002, %v1007
    %v1012 = vlaneseq
    %v1013 = vshrl.u32 %v1012, 7
    %v1014 = vsub.s32 0, %v1013
    %v1015 = vrot.slane %v975, %v1014
    %v1017 = vadd.f32 %v1009, %v1015
    %v1018 = vadd.f32 %v1010, %v1015
    %v1019 = vld [vmem:[#allocation8] sm:$0xff]
    %v1020 = vld [vmem:[#allocation8 + $0x8] sm:$0xff]
    %v1021 = vld [vmem:[#allocation8 + $0x10] sm:$0xff]
    %v1022 = vld [vmem:[#allocation8 + $0x18] sm:$0xff]
    %v1023 = vld [vmem:[%s8] sm:$0x1]
    %v1025 = vlaneseq
    %v1026 = vshrl.u32 %v1025, 7
    %v1027 = vsub.s32 0, %v1026
    %v1028 = vrot.slane %v1023, %v1027
    %v1031 = vsel %vm187, %v1017, 0
    %v1034 = vsel %vm187, %v1018, 0
    %1036 = vmatprep.subr.mxu0 0.0
    %1037 = vmatpush1.msra.mxu0 %v1019
    %1038 = vmatprep.subr.mxu0 0.0
    %1039 = vmatpush1.msra.mxu0 %v1020
    %1040 = vmatprep.subr.mxu0 0.0
    %1041 = vmatpush1.msra.mxu0 %v1021
    %1042 = vmatprep.subr.mxu0 0.0
    %1043 = vmatpush1.msra.mxu0 %v1022
    %1044 = vmatprep.subr.mxu0 0.0
    %1045 = vmatpush1.msra.mxu0 0.0
    %1046 = vmatprep.subr.mxu0 0.0
    %1047 = vmatpush1.msra.mxu0 0.0
    %1048 = vmatprep.subr.mxu0 0.0
    %1049 = vmatpush1.msra.mxu0 0.0
    %1050 = vmatprep.subr.mxu0 0.0
    %1051 = vmatpush1.msra.mxu0 0.0
    %1052 = vmatprep.subr.mxu0 0.0
    %1053 = vmatpush1.msra.mxu0 0.0
    %1054 = vmatprep.subr.mxu0 0.0
    %1055 = vmatpush1.msra.mxu0 0.0
    %1056 = vmatprep.subr.mxu0 0.0
    %1057 = vmatpush1.msra.mxu0 0.0
    %1058 = vmatprep.subr.mxu0 0.0
    %1059 = vmatpush1.msra.mxu0 0.0
    %1060 = vmatprep.subr.mxu0 0.0
    %1061 = vmatpush1.msra.mxu0 0.0
    %1062 = vmatprep.subr.mxu0 0.0
    %1063 = vmatpush1.msra.mxu0 0.0
    %1064 = vmatprep.subr.mxu0 0.0
    %1065 = vmatpush1.msra.mxu0 0.0
    %1066 = vmatprep.subr.mxu0 0.0
    %1067 = vmatpush1.msra.mxu0 0.0
    %1068 = vmatprep.subr.mxu0 0.0
    %1069 = vmatpush1.msra.mxu0 0.0
    %1070 = vmatprep.subr.mxu0 0.0
    %1071 = vmatpush1.msra.mxu0 0.0
    %1072 = vmatprep.subr.mxu0 0.0
    %1073 = vmatpush1.msra.mxu0 0.0
    %1074 = vmatprep.subr.mxu0 0.0
    %1075 = vmatpush1.msra.mxu0 0.0
    %1076 = vmatprep.subr.mxu0 0.0
    %1077 = vmatpush1.msra.mxu0 0.0
    %1078 = vmatprep.subr.mxu0 0.0
    %1079 = vmatpush1.msra.mxu0 0.0
    %1080 = vmatprep.subr.mxu0 0.0
    %1081 = vmatpush1.msra.mxu0 0.0
    %1082 = vmatprep.subr.mxu0 0.0
    %1083 = vmatpush1.msra.mxu0 0.0
    %1084 = vmatprep.subr.mxu0 0.0
    %1085 = vmatpush1.msra.mxu0 0.0
    %1086 = vmatprep.subr.mxu0 0.0
    %1087 = vmatpush1.msra.mxu0 0.0
    %1088 = vmatprep.subr.mxu0 0.0
    %1089 = vmatpush1.msra.mxu0 0.0
    %1090 = vmatprep.subr.mxu0 0.0
    %1091 = vmatpush1.msra.mxu0 0.0
    %1092 = vmatprep.subr.mxu0 0.0
    %1093 = vmatpush1.msra.mxu0 0.0
    %1094 = vmatprep.subr.mxu0 0.0
    %1095 = vmatpush1.msra.mxu0 0.0
    %1096 = vmatprep.subr.mxu0 0.0
    %1097 = vmatpush1.msra.mxu0 0.0
    %1098 = vmatprep.subr.mxu0 0.0
    %1099 = vmatpush1.msra.mxu0 0.0
    %1100 = vmatprep.mubr.f32.mxu0 0.0
    %1101 = vmatmul.mubr.f32.gmra.mrb[0].mxu0 %v1031
    %v1102 = vpop.f32.mrb[0].mxu0
    %v1103 = vadd.f32 %v1028, %v1102
    %v1104 = vpop.f32.mrb[0].mxu0
    %1105 = vmatprep.mubr.f32.mxu0 0.0
    %1106 = vmatmul.mubr.f32.gmra.mrb[0].mxu0 %v1034
    %v1107 = vpop.f32.mrb[0].mxu0
    %v1108 = vadd.f32 %v1028, %v1107
    %v1109 = vpop.f32.mrb[0].mxu0
    %1110 = vdwg.mxu0
    %v1111 = vmax.f32 %v1103, 0.0
    %v1112 = vmax.f32 %v1108, 0.0
    %v1113 = vld [vmem:[#allocation10] sm:$0xff]
    %v1114 = vld [vmem:[#allocation10 + $0x8] sm:$0xff]
    %v1115 = vld [vmem:[#allocation10 + $0x10] sm:$0xff]
    %v1116 = vld [vmem:[#allocation10 + $0x18] sm:$0xff]
    %v1117 = vld [vmem:[%s10] sm:$0x1]
    %v1119 = vlaneseq
    %v1120 = vshrl.u32 %v1119, 7
    %v1121 = vsub.s32 0, %v1120
    %v1122 = vrot.slane %v1117, %v1121
    %v1125 = vsel %vm187, %v1111, 0
    %v1128 = vsel %vm187, %v1112, 0
    %1130 = vmatprep.subr.mxu0 0.0
    %1131 = vmatpush1.msra.mxu0 %v1113
    %1132 = vmatprep.subr.mxu0 0.0
    %1133 = vmatpush1.msra.mxu0 %v1114
    %1134 = vmatprep.subr.mxu0 0.0
    %1135 = vmatpush1.msra.mxu0 %v1115
    %1136 = vmatprep.subr.mxu0 0.0
    %1137 = vmatpush1.msra.mxu0 %v1116
    %1138 = vmatprep.subr.mxu0 0.0
    %1139 = vmatpush1.msra.mxu0 0.0
    %1140 = vmatprep.subr.mxu0 0.0
    %1141 = vmatpush1.msra.mxu0 0.0
    %1142 = vmatprep.subr.mxu0 0.0
    %1143 = vmatpush1.msra.mxu0 0.0
    %1144 = vmatprep.subr.mxu0 0.0
    %1145 = vmatpush1.msra.mxu0 0.0
    %1146 = vmatprep.subr.mxu0 0.0
    %1147 = vmatpush1.msra.mxu0 0.0
    %1148 = vmatprep.subr.mxu0 0.0
    %1149 = vmatpush1.msra.mxu0 0.0
    %1150 = vmatprep.subr.mxu0 0.0
    %1151 = vmatpush1.msra.mxu0 0.0
    %1152 = vmatprep.subr.mxu0 0.0
    %1153 = vmatpush1.msra.mxu0 0.0
    %1154 = vmatprep.subr.mxu0 0.0
    %1155 = vmatpush1.msra.mxu0 0.0
    %1156 = vmatprep.subr.mxu0 0.0
    %1157 = vmatpush1.msra.mxu0 0.0
    %1158 = vmatprep.subr.mxu0 0.0
    %1159 = vmatpush1.msra.mxu0 0.0
    %1160 = vmatprep.subr.mxu0 0.0
    %1161 = vmatpush1.msra.mxu0 0.0
    %1162 = vmatprep.subr.mxu0 0.0
    %1163 = vmatpush1.msra.mxu0 0.0
    %1164 = vmatprep.subr.mxu0 0.0
    %1165 = vmatpush1.msra.mxu0 0.0
    %1166 = vmatprep.subr.mxu0 0.0
    %1167 = vmatpush1.msra.mxu0 0.0
    %1168 = vmatprep.subr.mxu0 0.0
    %1169 = vmatpush1.msra.mxu0 0.0
    %1170 = vmatprep.subr.mxu0 0.0
    %1171 = vmatpush1.msra.mxu0 0.0
    %1172 = vmatprep.subr.mxu0 0.0
    %1173 = vmatpush1.msra.mxu0 0.0
    %1174 = vmatprep.subr.mxu0 0.0
    %1175 = vmatpush1.msra.mxu0 0.0
    %1176 = vmatprep.subr.mxu0 0.0
    %1177 = vmatpush1.msra.mxu0 0.0
    %1178 = vmatprep.subr.mxu0 0.0
    %1179 = vmatpush1.msra.mxu0 0.0
    %1180 = vmatprep.subr.mxu0 0.0
    %1181 = vmatpush1.msra.mxu0 0.0
    %1182 = vmatprep.subr.mxu0 0.0
    %1183 = vmatpush1.msra.mxu0 0.0
    %1184 = vmatprep.subr.mxu0 0.0
    %1185 = vmatpush1.msra.mxu0 0.0
    %1186 = vmatprep.subr.mxu0 0.0
    %1187 = vmatpush1.msra.mxu0 0.0
    %1188 = vmatprep.subr.mxu0 0.0
    %1189 = vmatpush1.msra.mxu0 0.0
    %1190 = vmatprep.subr.mxu0 0.0
    %1191 = vmatpush1.msra.mxu0 0.0
    %1192 = vmatprep.subr.mxu0 0.0
    %1193 = vmatpush1.msra.mxu0 0.0
    %1194 = vmatprep.mubr.f32.mxu0 0.0
    %1195 = vmatmul.mubr.f32.gmra.mrb[0].mxu0 %v1125
    %v1196 = vpop.f32.mrb[0].mxu0
    %v1197 = vadd.f32 %v1122, %v1196
    %v1198 = vpop.f32.mrb[0].mxu0
    %1199 = vmatprep.mubr.f32.mxu0 0.0
    %1200 = vmatmul.mubr.f32.gmra.mrb[0].mxu0 %v1128
    %v1201 = vpop.f32.mrb[0].mxu0
    %v1202 = vadd.f32 %v1122, %v1201
    %v1203 = vpop.f32.mrb[0].mxu0
    %1204 = vdwg.mxu0
    %v1205 = vadd.f32 %v1197, %v1017
    %v1206 = vadd.f32 %v1202, %v1018
    %v1207 = vld [vmem:[%s11] sm:$0x1]
    %v1208 = vld [vmem:[%s12] sm:$0x1]
    %v1209 = vsel %vm187, %v1205, 0.0
    %1210 = vadd.xlane.f32.xlu0 %v1209
    %v1211 = vpop.xlane.xlu0 %1210
    %v1212 = vsel %vm187, %v1206, 0.0
    %1213 = vadd.xlane.f32.xlu0 %v1212
    %v1214 = vpop.xlane.xlu0 %1213
    %v1215 = vmul.f32 %v1211, %v982
    %v1216 = vmul.f32 %v1214, %v982
    %v1217 = vsub.f32 %v1205, %v1215
    %v1218 = vsub.f32 %v1206, %v1216
    %v1219 = vmul.f32 %v1217, %v1217
    %v1220 = vmul.f32 %v1218, %v1218
    %v1221 = vsel %vm187, %v1219, 0.0
    %1222 = vadd.xlane.f32.xlu0 %v1221
    %v1223 = vpop.xlane.xlu0 %1222
    %v1224 = vsel %vm187, %v1220, 0.0
    %1225 = vadd.xlane.f32.xlu0 %v1224
    %v1226 = vpop.xlane.xlu0 %1225
    %v1227 = vmul.f32 %v1223, %v982
    %v1228 = vmul.f32 %v1226, %v982
    %v1229 = vadd.f32 %v1227, 1e-05
    %v1230 = vadd.f32 %v1228, 1e-05
    %v1231 = vrsqrt.pop %v1229
    %v1232 = vrsqrt.pop %v1230
    %v1233 = vmul.f32 %v1217, %v1231
    %v1234 = vmul.f32 %v1218, %v1232
    %v1236 = vlaneseq
    %v1237 = vshrl.u32 %v1236, 7
    %v1238 = vsub.s32 0, %v1237
    %v1239 = vrot.slane %v1207, %v1238
    %v1241 = vmul.f32 %v1233, %v1239
    %v1242 = vmul.f32 %v1234, %v1239
    %v1244 = vlaneseq
    %v1245 = vshrl.u32 %v1244, 7
    %v1246 = vsub.s32 0, %v1245
    %v1247 = vrot.slane %v1208, %v1246
    %v1249 = vadd.f32 %v1241, %v1247
    %v1250 = vadd.f32 %v1242, %v1247
    %s1251 = scalar_lea.vmem [#allocation7], 32
    %v1252 = vld [vmem:[%s1251] sm:$0xff]
    %v1253 = vld [vmem:[%s1251 + $0x8] sm:$0xff]
    %v1254 = vld [vmem:[%s1251 + $0x10] sm:$0xff]
    %v1255 = vld [vmem:[%s1251 + $0x18] sm:$0xff]
    %s1256 = scalar_lea.vmem %s4, 1
    %v1257 = vld [vmem:[%s1256] sm:$0x1]
    %v1259 = vlaneseq
    %v1260 = vshrl.u32 %v1259, 7
    %v1261 = vsub.s32 0, %v1260
    %v1262 = vrot.slane %v1257, %v1261
    %v1265 = vsel %vm187, %v1249, 0
    %v1268 = vsel %vm187, %v1250, 0
    %1270 = vmatprep.subr.mxu0 0.0
    %1271 = vmatpush1.msra.mxu0 %v1252
    %1272 = vmatprep.subr.mxu0 0.0
    %1273 = vmatpush1.msra.mxu0 %v1253
    %1274 = vmatprep.subr.mxu0 0.0
    %1275 = vmatpush1.msra.mxu0 %v1254
    %1276 = vmatprep.subr.mxu0 0.0
    %1277 = vmatpush1.msra.mxu0 %v1255
    %1278 = vmatprep.subr.mxu0 0.0
    %1279 = vmatpush1.msra.mxu0 0.0
    %1280 = vmatprep.subr.mxu0 0.0
    %1281 = vmatpush1.msra.mxu0 0.0
    %1282 = vmatprep.subr.mxu0 0.0
    %1283 = vmatpush1.msra.mxu0 0.0
    %1284 = vmatprep.subr.mxu0 0.0
    %1285 = vmatpush1.msra.mxu0 0.0
    %1286 = vmatprep.subr.mxu0 0.0
    %1287 = vmatpush1.msra.mxu0 0.0
    %1288 = vmatprep.subr.mxu0 0.0
    %1289 = vmatpush1.msra.mxu0 0.0
    %1290 = vmatprep.subr.mxu0 0.0
    %1291 = vmatpush1.msra.mxu0 0.0
    %1292 = vmatprep.subr.mxu0 0.0
    %1293 = vmatpush1.msra.mxu0 0.0
    %1294 = vmatprep.subr.mxu0 0.0
    %1295 = vmatpush1.msra.mxu0 0.0
    %1296 = vmatprep.subr.mxu0 0.0
    %1297 = vmatpush1.msra.mxu0 0.0
    %1298 = vmatprep.subr.mxu0 0.0
    %1299 = vmatpush1.msra.mxu0 0.0
    %1300 = vmatprep.subr.mxu0 0.0
    %1301 = vmatpush1.msra.mxu0 0.0
    %1302 = vmatprep.subr.mxu0 0.0
    %1303 = vmatpush1.msra.mxu0 0.0
    %1304 = vmatprep.subr.mxu0 0.0
    %1305 = vmatpush1.msra.mxu0 0.0
    %1306 = vmatprep.subr.mxu0 0.0
    %1307 = vmatpush1.msra.mxu0 0.0
    %1308 = vmatprep.subr.mxu0 0.0
    %1309 = vmatpush1.msra.mxu0 0.0
    %1310 = vmatprep.subr.mxu0 0.0
    %1311 = vmatpush1.msra.mxu0 0.0
    %1312 = vmatprep.subr.mxu0 0.0
    %1313 = vmatpush1.msra.mxu0 0.0
    %1314 = vmatprep.subr.mxu0 0.0
    %1315 = vmatpush1.msra.mxu0 0.0
    %1316 = vmatprep.subr.mxu0 0.0
    %1317 = vmatpush1.msra.mxu0 0.0
    %1318 = vmatprep.subr.mxu0 0.0
    %1319 = vmatpush1.msra.mxu0 0.0
    %1320 = vmatprep.subr.mxu0 0.0
    %1321 = vmatpush1.msra.mxu0 0.0
    %1322 = vmatprep.subr.mxu0 0.0
    %1323 = vmatpush1.msra.mxu0 0.0
    %1324 = vmatprep.subr.mxu0 0.0
    %1325 = vmatpush1.msra.mxu0 0.0
    %1326 = vmatprep.subr.mxu0 0.0
    %1327 = vmatpush1.msra.mxu0 0.0
    %1328 = vmatprep.subr.mxu0 0.0
    %1329 = vmatpush1.msra.mxu0 0.0
    %1330 = vmatprep.subr.mxu0 0.0
    %1331 = vmatpush1.msra.mxu0 0.0
    %1332 = vmatprep.subr.mxu0 0.0
    %1333 = vmatpush1.msra.mxu0 0.0
    %1334 = vmatprep.mubr.f32.mxu0 0.0
    %1335 = vmatmul.mubr.f32.gmra.mrb[0].mxu0 %v1265
    %v1336 = vpop.f32.mrb[0].mxu0
    %v1337 = vadd.f32 %v1262, %v1336
    %v1338 = vpop.f32.mrb[0].mxu0
    %1339 = vmatprep.mubr.f32.mxu0 0.0
    %1340 = vmatmul.mubr.f32.gmra.mrb[0].mxu0 %v1268
    %v1341 = vpop.f32.mrb[0].mxu0
    %v1342 = vadd.f32 %v1262, %v1341
    %v1343 = vpop.f32.mrb[0].mxu0
    %1344 = vdwg.mxu0
    %1347 = vrot.lane.b32.xlu0 %v1337, 112
    %v1348 = vpop.permute.xlu0 %1347
    %1349 = vrot.lane.b32.xlu0 %v1342, 112
    %v1350 = vpop.permute.xlu0 %1349
    %1351 = vrot.lane.b32.xlu0 %v1337, 96
    %v1352 = vpop.permute.xlu0 %1351
    %v1353 = vsel %vm277, %v1337, 0
    %v1355 = vsel %vm277, %v1352, 0
    %1357 = vmatprep.subr.mxu0 0.0
    %1358 = vmatpush1.xpose.msra.mxu0 %v1355
    %1359 = vmatprep.subr.mxu0 0.0
    %1360 = vmatpush1.xpose.msra.mxu0 0.0
    %1361 = vmatprep.subr.mxu0 0.0
    %1362 = vmatpush1.xpose.msra.mxu0 0.0
    %1363 = vmatprep.subr.mxu0 0.0
    %1364 = vmatpush1.xpose.msra.mxu0 0.0
    %1365 = vmatprep.subr.mxu0 0.0
    %1366 = vmatpush1.xpose.msra.mxu0 0.0
    %1367 = vmatprep.subr.mxu0 0.0
    %1368 = vmatpush1.xpose.msra.mxu0 0.0
    %1369 = vmatprep.subr.mxu0 0.0
    %1370 = vmatpush1.xpose.msra.mxu0 0.0
    %1371 = vmatprep.subr.mxu0 0.0
    %1372 = vmatpush1.xpose.msra.mxu0 0.0
    %1373 = vmatprep.subr.mxu0 0.0
    %1374 = vmatpush1.xpose.msra.mxu0 0.0
    %1375 = vmatprep.subr.mxu0 0.0
    %1376 = vmatpush1.xpose.msra.mxu0 0.0
    %1377 = vmatprep.subr.mxu0 0.0
    %1378 = vmatpush1.xpose.msra.mxu0 0.0
    %1379 = vmatprep.subr.mxu0 0.0
    %1380 = vmatpush1.xpose.msra.mxu0 0.0
    %1381 = vmatprep.subr.mxu0 0.0
    %1382 = vmatpush1.xpose.msra.mxu0 0.0
    %1383 = vmatprep.subr.mxu0 0.0
    %1384 = vmatpush1.xpose.msra.mxu0 0.0
    %1385 = vmatprep.subr.mxu0 0.0
    %1386 = vmatpush1.xpose.msra.mxu0 0.0
    %1387 = vmatprep.subr.mxu0 0.0
    %1388 = vmatpush1.xpose.msra.mxu0 0.0
    %1389 = vmatprep.subr.mxu0 0.0
    %1390 = vmatpush1.xpose.msra.mxu0 0.0
    %1391 = vmatprep.subr.mxu0 0.0
    %1392 = vmatpush1.xpose.msra.mxu0 0.0
    %1393 = vmatprep.subr.mxu0 0.0
    %1394 = vmatpush1.xpose.msra.mxu0 0.0
    %1395 = vmatprep.subr.mxu0 0.0
    %1396 = vmatpush1.xpose.msra.mxu0 0.0
    %1397 = vmatprep.subr.mxu0 0.0
    %1398 = vmatpush1.xpose.msra.mxu0 0.0
    %1399 = vmatprep.subr.mxu0 0.0
    %1400 = vmatpush1.xpose.msra.mxu0 0.0
    %1401 = vmatprep.subr.mxu0 0.0
    %1402 = vmatpush1.xpose.msra.mxu0 0.0
    %1403 = vmatprep.subr.mxu0 0.0
    %1404 = vmatpush1.xpose.msra.mxu0 0.0
    %1405 = vmatprep.subr.mxu0 0.0
    %1406 = vmatpush1.xpose.msra.mxu0 0.0
    %1407 = vmatprep.subr.mxu0 0.0
    %1408 = vmatpush1.xpose.msra.mxu0 0.0
    %1409 = vmatprep.subr.mxu0 0.0
    %1410 = vmatpush1.xpose.msra.mxu0 0.0
    %1411 = vmatprep.subr.mxu0 0.0
    %1412 = vmatpush1.xpose.msra.mxu0 0.0
    %1413 = vmatprep.subr.mxu0 0.0
    %1414 = vmatpush1.xpose.msra.mxu0 0.0
    %1415 = vmatprep.subr.mxu0 0.0
    %1416 = vmatpush1.xpose.msra.mxu0 0.0
    %1417 = vmatprep.subr.mxu0 0.0
    %1418 = vmatpush1.xpose.msra.mxu0 0.0
    %1419 = vmatprep.subr.mxu0 0.0
    %1420 = vmatpush1.xpose.msra.mxu0 0.0
    %1421 = vmatprep.mubr.f32.mxu0 0.0
    %1422 = vmatmul.mubr.f32.gmra.mrb[0].mxu0 %v1353
    %v1423 = vpop.f32.mrb[0].mxu0
    %v1424 = vadd.f32 0.0, %v1423
    %v1425 = vpop.f32.mrb[0].mxu0
    %1426 = vdwg.mxu0
    %1427 = vrot.lane.b32.xlu0 %v1342, 96
    %v1428 = vpop.permute.xlu0 %1427
    %v1429 = vsel %vm277, %v1342, 0
    %v1431 = vsel %vm277, %v1428, 0
    %1433 = vmatprep.subr.mxu0 0.0
    %1434 = vmatpush1.xpose.msra.mxu0 %v1431
    %1435 = vmatprep.subr.mxu0 0.0
    %1436 = vmatpush1.xpose.msra.mxu0 0.0
    %1437 = vmatprep.subr.mxu0 0.0
    %1438 = vmatpush1.xpose.msra.mxu0 0.0
    %1439 = vmatprep.subr.mxu0 0.0
    %1440 = vmatpush1.xpose.msra.mxu0 0.0
    %1441 = vmatprep.subr.mxu0 0.0
    %1442 = vmatpush1.xpose.msra.mxu0 0.0
    %1443 = vmatprep.subr.mxu0 0.0
    %1444 = vmatpush1.xpose.msra.mxu0 0.0
    %1445 = vmatprep.subr.mxu0 0.0
    %1446 = vmatpush1.xpose.msra.mxu0 0.0
    %1447 = vmatprep.subr.mxu0 0.0
    %1448 = vmatpush1.xpose.msra.mxu0 0.0
    %1449 = vmatprep.subr.mxu0 0.0
    %1450 = vmatpush1.xpose.msra.mxu0 0.0
    %1451 = vmatprep.subr.mxu0 0.0
    %1452 = vmatpush1.xpose.msra.mxu0 0.0
    %1453 = vmatprep.subr.mxu0 0.0
    %1454 = vmatpush1.xpose.msra.mxu0 0.0
    %1455 = vmatprep.subr.mxu0 0.0
    %1456 = vmatpush1.xpose.msra.mxu0 0.0
    %1457 = vmatprep.subr.mxu0 0.0
    %1458 = vmatpush1.xpose.msra.mxu0 0.0
    %1459 = vmatprep.subr.mxu0 0.0
    %1460 = vmatpush1.xpose.msra.mxu0 0.0
    %1461 = vmatprep.subr.mxu0 0.0
    %1462 = vmatpush1.xpose.msra.mxu0 0.0
    %1463 = vmatprep.subr.mxu0 0.0
    %1464 = vmatpush1.xpose.msra.mxu0 0.0
    %1465 = vmatprep.subr.mxu0 0.0
    %1466 = vmatpush1.xpose.msra.mxu0 0.0
    %1467 = vmatprep.subr.mxu0 0.0
    %1468 = vmatpush1.xpose.msra.mxu0 0.0
    %1469 = vmatprep.subr.mxu0 0.0
    %1470 = vmatpush1.xpose.msra.mxu0 0.0
    %1471 = vmatprep.subr.mxu0 0.0
    %1472 = vmatpush1.xpose.msra.mxu0 0.0
    %1473 = vmatprep.subr.mxu0 0.0
    %1474 = vmatpush1.xpose.msra.mxu0 0.0
    %1475 = vmatprep.subr.mxu0 0.0
    %1476 = vmatpush1.xpose.msra.mxu0 0.0
    %1477 = vmatprep.subr.mxu0 0.0
    %1478 = vmatpush1.xpose.msra.mxu0 0.0
    %1479 = vmatprep.subr.mxu0 0.0
    %1480 = vmatpush1.xpose.msra.mxu0 0.0
    %1481 = vmatprep.subr.mxu0 0.0
    %1482 = vmatpush1.xpose.msra.mxu0 0.0
    %1483 = vmatprep.subr.mxu0 0.0
    %1484 = vmatpush1.xpose.msra.mxu0 0.0
    %1485 = vmatprep.subr.mxu0 0.0
    %1486 = vmatpush1.xpose.msra.mxu0 0.0
    %1487 = vmatprep.subr.mxu0 0.0
    %1488 = vmatpush1.xpose.msra.mxu0 0.0
    %1489 = vmatprep.subr.mxu0 0.0
    %1490 = vmatpush1.xpose.msra.mxu0 0.0
    %1491 = vmatprep.subr.mxu0 0.0
    %1492 = vmatpush1.xpose.msra.mxu0 0.0
    %1493 = vmatprep.subr.mxu0 0.0
    %1494 = vmatpush1.xpose.msra.mxu0 0.0
    %1495 = vmatprep.subr.mxu0 0.0
    %1496 = vmatpush1.xpose.msra.mxu0 0.0
    %1497 = vmatprep.mubr.f32.mxu0 0.0
    %1498 = vmatmul.mubr.f32.gmra.mrb[0].mxu0 %v1429
    %v1499 = vpop.f32.mrb[0].mxu0
    %v1500 = vadd.f32 0.0, %v1499
    %v1501 = vpop.f32.mrb[0].mxu0
    %1502 = vdwg.mxu0
    %1503 = vrot.lane.b32.xlu0 %v1348, 96
    %v1504 = vpop.permute.xlu0 %1503
    %v1505 = vsel %vm277, %v1348, 0
    %v1507 = vsel %vm277, %v1504, 0
    %1509 = vmatprep.subr.mxu0 0.0
    %1510 = vmatpush1.xpose.msra.mxu0 %v1507
    %1511 = vmatprep.subr.mxu0 0.0
    %1512 = vmatpush1.xpose.msra.mxu0 0.0
    %1513 = vmatprep.subr.mxu0 0.0
    %1514 = vmatpush1.xpose.msra.mxu0 0.0
    %1515 = vmatprep.subr.mxu0 0.0
    %1516 = vmatpush1.xpose.msra.mxu0 0.0
    %1517 = vmatprep.subr.mxu0 0.0
    %1518 = vmatpush1.xpose.msra.mxu0 0.0
    %1519 = vmatprep.subr.mxu0 0.0
    %1520 = vmatpush1.xpose.msra.mxu0 0.0
    %1521 = vmatprep.subr.mxu0 0.0
    %1522 = vmatpush1.xpose.msra.mxu0 0.0
    %1523 = vmatprep.subr.mxu0 0.0
    %1524 = vmatpush1.xpose.msra.mxu0 0.0
    %1525 = vmatprep.subr.mxu0 0.0
    %1526 = vmatpush1.xpose.msra.mxu0 0.0
    %1527 = vmatprep.subr.mxu0 0.0
    %1528 = vmatpush1.xpose.msra.mxu0 0.0
    %1529 = vmatprep.subr.mxu0 0.0
    %1530 = vmatpush1.xpose.msra.mxu0 0.0
    %1531 = vmatprep.subr.mxu0 0.0
    %1532 = vmatpush1.xpose.msra.mxu0 0.0
    %1533 = vmatprep.subr.mxu0 0.0
    %1534 = vmatpush1.xpose.msra.mxu0 0.0
    %1535 = vmatprep.subr.mxu0 0.0
    %1536 = vmatpush1.xpose.msra.mxu0 0.0
    %1537 = vmatprep.subr.mxu0 0.0
    %1538 = vmatpush1.xpose.msra.mxu0 0.0
    %1539 = vmatprep.subr.mxu0 0.0
    %1540 = vmatpush1.xpose.msra.mxu0 0.0
    %1541 = vmatprep.subr.mxu0 0.0
    %1542 = vmatpush1.xpose.msra.mxu0 0.0
    %1543 = vmatprep.subr.mxu0 0.0
    %1544 = vmatpush1.xpose.msra.mxu0 0.0
    %1545 = vmatprep.subr.mxu0 0.0
    %1546 = vmatpush1.xpose.msra.mxu0 0.0
    %1547 = vmatprep.subr.mxu0 0.0
    %1548 = vmatpush1.xpose.msra.mxu0 0.0
    %1549 = vmatprep.subr.mxu0 0.0
    %1550 = vmatpush1.xpose.msra.mxu0 0.0
    %1551 = vmatprep.subr.mxu0 0.0
    %1552 = vmatpush1.xpose.msra.mxu0 0.0
    %1553 = vmatprep.subr.mxu0 0.0
    %1554 = vmatpush1.xpose.msra.mxu0 0.0
    %1555 = vmatprep.subr.mxu0 0.0
    %1556 = vmatpush1.xpose.msra.mxu0 0.0
    %1557 = vmatprep.subr.mxu0 0.0
    %1558 = vmatpush1.xpose.msra.mxu0 0.0
    %1559 = vmatprep.subr.mxu0 0.0
    %1560 = vmatpush1.xpose.msra.mxu0 0.0
    %1561 = vmatprep.subr.mxu0 0.0
    %1562 = vmatpush1.xpose.msra.mxu0 0.0
    %1563 = vmatprep.subr.mxu0 0.0
    %1564 = vmatpush1.xpose.msra.mxu0 0.0
    %1565 = vmatprep.subr.mxu0 0.0
    %1566 = vmatpush1.xpose.msra.mxu0 0.0
    %1567 = vmatprep.subr.mxu0 0.0
    %1568 = vmatpush1.xpose.msra.mxu0 0.0
    %1569 = vmatprep.subr.mxu0 0.0
    %1570 = vmatpush1.xpose.msra.mxu0 0.0
    %1571 = vmatprep.subr.mxu0 0.0
    %1572 = vmatpush1.xpose.msra.mxu0 0.0
    %1573 = vmatprep.mubr.f32.mxu0 0.0
    %1574 = vmatmul.mubr.f32.gmra.mrb[0].mxu0 %v1505
    %v1575 = vpop.f32.mrb[0].mxu0
    %v1576 = vadd.f32 0.0, %v1575
    %v1577 = vpop.f32.mrb[0].mxu0
    %1578 = vdwg.mxu0
    %1579 = vrot.lane.b32.xlu0 %v1350, 96
    %v1580 = vpop.permute.xlu0 %1579
    %v1581 = vsel %vm277, %v1350, 0
    %v1583 = vsel %vm277, %v1580, 0
    %1585 = vmatprep.subr.mxu0 0.0
    %1586 = vmatpush1.xpose.msra.mxu0 %v1583
    %1587 = vmatprep.subr.mxu0 0.0
    %1588 = vmatpush1.xpose.msra.mxu0 0.0
    %1589 = vmatprep.subr.mxu0 0.0
    %1590 = vmatpush1.xpose.msra.mxu0 0.0
    %1591 = vmatprep.subr.mxu0 0.0
    %1592 = vmatpush1.xpose.msra.mxu0 0.0
    %1593 = vmatprep.subr.mxu0 0.0
    %1594 = vmatpush1.xpose.msra.mxu0 0.0
    %1595 = vmatprep.subr.mxu0 0.0
    %1596 = vmatpush1.xpose.msra.mxu0 0.0
    %1597 = vmatprep.subr.mxu0 0.0
    %1598 = vmatpush1.xpose.msra.mxu0 0.0
    %1599 = vmatprep.subr.mxu0 0.0
    %1600 = vmatpush1.xpose.msra.mxu0 0.0
    %1601 = vmatprep.subr.mxu0 0.0
    %1602 = vmatpush1.xpose.msra.mxu0 0.0
    %1603 = vmatprep.subr.mxu0 0.0
    %1604 = vmatpush1.xpose.msra.mxu0 0.0
    %1605 = vmatprep.subr.mxu0 0.0
    %1606 = vmatpush1.xpose.msra.mxu0 0.0
    %1607 = vmatprep.subr.mxu0 0.0
    %1608 = vmatpush1.xpose.msra.mxu0 0.0
    %1609 = vmatprep.subr.mxu0 0.0
    %1610 = vmatpush1.xpose.msra.mxu0 0.0
    %1611 = vmatprep.subr.mxu0 0.0
    %1612 = vmatpush1.xpose.msra.mxu0 0.0
    %1613 = vmatprep.subr.mxu0 0.0
    %1614 = vmatpush1.xpose.msra.mxu0 0.0
    %1615 = vmatprep.subr.mxu0 0.0
    %1616 = vmatpush1.xpose.msra.mxu0 0.0
    %1617 = vmatprep.subr.mxu0 0.0
    %1618 = vmatpush1.xpose.msra.mxu0 0.0
    %1619 = vmatprep.subr.mxu0 0.0
    %1620 = vmatpush1.xpose.msra.mxu0 0.0
    %1621 = vmatprep.subr.mxu0 0.0
    %1622 = vmatpush1.xpose.msra.mxu0 0.0
    %1623 = vmatprep.subr.mxu0 0.0
    %1624 = vmatpush1.xpose.msra.mxu0 0.0
    %1625 = vmatprep.subr.mxu0 0.0
    %1626 = vmatpush1.xpose.msra.mxu0 0.0
    %1627 = vmatprep.subr.mxu0 0.0
    %1628 = vmatpush1.xpose.msra.mxu0 0.0
    %1629 = vmatprep.subr.mxu0 0.0
    %1630 = vmatpush1.xpose.msra.mxu0 0.0
    %1631 = vmatprep.subr.mxu0 0.0
    %1632 = vmatpush1.xpose.msra.mxu0 0.0
    %1633 = vmatprep.subr.mxu0 0.0
    %1634 = vmatpush1.xpose.msra.mxu0 0.0
    %1635 = vmatprep.subr.mxu0 0.0
    %1636 = vmatpush1.xpose.msra.mxu0 0.0
    %1637 = vmatprep.subr.mxu0 0.0
    %1638 = vmatpush1.xpose.msra.mxu0 0.0
    %1639 = vmatprep.subr.mxu0 0.0
    %1640 = vmatpush1.xpose.msra.mxu0 0.0
    %1641 = vmatprep.subr.mxu0 0.0
    %1642 = vmatpush1.xpose.msra.mxu0 0.0
    %1643 = vmatprep.subr.mxu0 0.0
    %1644 = vmatpush1.xpose.msra.mxu0 0.0
    %1645 = vmatprep.subr.mxu0 0.0
    %1646 = vmatpush1.xpose.msra.mxu0 0.0
    %1647 = vmatprep.subr.mxu0 0.0
    %1648 = vmatpush1.xpose.msra.mxu0 0.0
    %1649 = vmatprep.mubr.f32.mxu0 0.0
    %1650 = vmatmul.mubr.f32.gmra.mrb[0].mxu0 %v1581
    %v1651 = vpop.f32.mrb[0].mxu0
    %v1652 = vadd.f32 0.0, %v1651
    %v1653 = vpop.f32.mrb[0].mxu0
    %1654 = vdwg.mxu0
    %v1655 = vmul.f32 %v1424, 0.25
    %v1656 = vmul.f32 %v1500, 0.25
    %v1657 = vmul.f32 %v1576, 0.25
    %v1658 = vmul.f32 %v1652, 0.25
    %v1659 = vadd.f32 %v1655, %v589
    %v1660 = vadd.f32 %v1656, %v593
    %v1661 = vadd.f32 %v1657, %v589
    %v1662 = vadd.f32 %v1658, %v593
    %v1663 = vsel %vm600, %v1659, -inf
    %v1664 = vsel %vm600, %v1660, -inf
    %v1665 = vsel %vm600, %v1661, -inf
    %v1666 = vsel %vm600, %v1662, -inf
    %v1667 = vmax.f32 %v1663, %v1664
    %v1668 = vmax.f32 %v1665, %v1666
    %v1669 = vmax.f32 %v1667, %v1668
    %1670 = vmax.xlane.f32.xlu0 %v1669
    %v1671 = vpop.xlane.xlu0 %1670
    %v1672 = vrot.slane %v1671, 4
    %v1673 = vmax.f32 %v1671, %v1672
    %v1674 = vrot.slane %v1673, 2
    %v1675 = vmax.f32 %v1673, %v1674
    %v1676 = vrot.slane %v1675, 1
    %v1677 = vmax.f32 %v1675, %v1676
    %s1678 = vtos %v1677
    %v1679 = vstv %s1678
    %v1680 = vsub.f32 %v1659, %v1679
    %v1681 = vsub.f32 %v1660, %v1679
    %v1682 = vsub.f32 %v1661, %v1679
    %v1683 = vsub.f32 %v1662, %v1679
    %v1684 = vmul.f32 %v1680, 1.442695
    %v1685 = vpow.pop %v1684
    %v1686 = vmul.f32 %v1681, 1.442695
    %v1687 = vpow.pop %v1686
    %v1688 = vmul.f32 %v1682, 1.442695
    %v1689 = vpow.pop %v1688
    %v1690 = vmul.f32 %v1683, 1.442695
    %v1691 = vpow.pop %v1690
    %v1692 = vsel %vm600, %v1685, 0.0
    %1693 = vadd.xlane.f32.xlu0 %v1692
    %v1694 = vpop.xlane.xlu0 %1693
    %v1695 = vsel %vm600, %v1687, 0.0
    %1696 = vadd.xlane.f32.xlu0 %v1695
    %v1697 = vpop.xlane.xlu0 %1696
    %v1698 = vsel %vm600, %v1689, 0.0
    %1699 = vadd.xlane.f32.xlu0 %v1698
    %v1700 = vpop.xlane.xlu0 %1699
    %v1701 = vsel %vm600, %v1691, 0.0
    %1702 = vadd.xlane.f32.xlu0 %v1701
    %v1703 = vpop.xlane.xlu0 %1702
    %vm1704 = vcmp.eq.f32.partialorder %v1694, 0.0
    %vm1705 = vcmp.eq.f32.partialorder %v1697, 0.0
    %vm1706 = vcmp.eq.f32.partialorder %v1700, 0.0
    %vm1707 = vcmp.eq.f32.partialorder %v1703, 0.0
    %v1708 = vsel %vm1704, 1.0, %v1694
    %v1709 = vsel %vm1705, 1.0, %v1697
    %v1710 = vsel %vm1706, 1.0, %v1700
    %v1711 = vsel %vm1707, 1.0, %v1703
    %v1712 = vrcp.pop %v1708
    %v1713 = vmul.f32 %v1685, %v1712
    %v1714 = vrcp.pop %v1709
    %v1715 = vmul.f32 %v1687, %v1714
    %v1716 = vrcp.pop %v1710
    %v1717 = vmul.f32 %v1689, %v1716
    %v1718 = vrcp.pop %v1711
    %v1719 = vmul.f32 %v1691, %v1718
    %1720 = vrot.lane.b32.xlu0 %v1337, 64
    %v1721 = vpop.permute.xlu0 %1720
    %v1724 = vsel %vm600, %v1713, 0
    %1726 = vmatprep.subr.mxu0 0.0
    %1727 = vmatpush1.msra.mxu0 %v1721
    %1728 = vmatprep.subr.mxu0 0.0
    %1729 = vmatpush1.msra.mxu0 0.0
    %1730 = vmatprep.subr.mxu0 0.0
    %1731 = vmatpush1.msra.mxu0 0.0
    %1732 = vmatprep.subr.mxu0 0.0
    %1733 = vmatpush1.msra.mxu0 0.0
    %1734 = vmatprep.subr.mxu0 0.0
    %1735 = vmatpush1.msra.mxu0 0.0
    %1736 = vmatprep.subr.mxu0 0.0
    %1737 = vmatpush1.msra.mxu0 0.0
    %1738 = vmatprep.subr.mxu0 0.0
    %1739 = vmatpush1.msra.mxu0 0.0
    %1740 = vmatprep.subr.mxu0 0.0
    %1741 = vmatpush1.msra.mxu0 0.0
    %1742 = vmatprep.subr.mxu0 0.0
    %1743 = vmatpush1.msra.mxu0 0.0
    %1744 = vmatprep.subr.mxu0 0.0
    %1745 = vmatpush1.msra.mxu0 0.0
    %1746 = vmatprep.subr.mxu0 0.0
    %1747 = vmatpush1.msra.mxu0 0.0
    %1748 = vmatprep.subr.mxu0 0.0
    %1749 = vmatpush1.msra.mxu0 0.0
    %1750 = vmatprep.subr.mxu0 0.0
    %1751 = vmatpush1.msra.mxu0 0.0
    %1752 = vmatprep.subr.mxu0 0.0
    %1753 = vmatpush1.msra.mxu0 0.0
    %1754 = vmatprep.subr.mxu0 0.0
    %1755 = vmatpush1.msra.mxu0 0.0
    %1756 = vmatprep.subr.mxu0 0.0
    %1757 = vmatpush1.msra.mxu0 0.0
    %1758 = vmatprep.subr.mxu0 0.0
    %1759 = vmatpush1.msra.mxu0 0.0
    %1760 = vmatprep.subr.mxu0 0.0
    %1761 = vmatpush1.msra.mxu0 0.0
    %1762 = vmatprep.subr.mxu0 0.0
    %1763 = vmatpush1.msra.mxu0 0.0
    %1764 = vmatprep.subr.mxu0 0.0
    %1765 = vmatpush1.msra.mxu0 0.0
    %1766 = vmatprep.subr.mxu0 0.0
    %1767 = vmatpush1.msra.mxu0 0.0
    %1768 = vmatprep.subr.mxu0 0.0
    %1769 = vmatpush1.msra.mxu0 0.0
    %1770 = vmatprep.subr.mxu0 0.0
    %1771 = vmatpush1.msra.mxu0 0.0
    %1772 = vmatprep.subr.mxu0 0.0
    %1773 = vmatpush1.msra.mxu0 0.0
    %1774 = vmatprep.subr.mxu0 0.0
    %1775 = vmatpush1.msra.mxu0 0.0
    %1776 = vmatprep.subr.mxu0 0.0
    %1777 = vmatpush1.msra.mxu0 0.0
    %1778 = vmatprep.subr.mxu0 0.0
    %1779 = vmatpush1.msra.mxu0 0.0
    %1780 = vmatprep.subr.mxu0 0.0
    %1781 = vmatpush1.msra.mxu0 0.0
    %1782 = vmatprep.subr.mxu0 0.0
    %1783 = vmatpush1.msra.mxu0 0.0
    %1784 = vmatprep.subr.mxu0 0.0
    %1785 = vmatpush1.msra.mxu0 0.0
    %1786 = vmatprep.subr.mxu0 0.0
    %1787 = vmatpush1.msra.mxu0 0.0
    %1788 = vmatprep.subr.mxu0 0.0
    %1789 = vmatpush1.msra.mxu0 0.0
    %1790 = vmatprep.mubr.f32.mxu0 0.0
    %1791 = vmatmul.mubr.f32.gmra.mrb[0].mxu0 %v1724
    %v1792 = vpop.f32.mrb[0].mxu0
    %v1793 = vadd.f32 0.0, %v1792
    %v1794 = vpop.f32.mrb[0].mxu0
    %1795 = vdwg.mxu0
    %1796 = vrot.lane.b32.xlu0 %v1342, 64
    %v1797 = vpop.permute.xlu0 %1796
    %v1800 = vsel %vm600, %v1715, 0
    %1802 = vmatprep.subr.mxu0 0.0
    %1803 = vmatpush1.msra.mxu0 %v1797
    %1804 = vmatprep.subr.mxu0 0.0
    %1805 = vmatpush1.msra.mxu0 0.0
    %1806 = vmatprep.subr.mxu0 0.0
    %1807 = vmatpush1.msra.mxu0 0.0
    %1808 = vmatprep.subr.mxu0 0.0
    %1809 = vmatpush1.msra.mxu0 0.0
    %1810 = vmatprep.subr.mxu0 0.0
    %1811 = vmatpush1.msra.mxu0 0.0
    %1812 = vmatprep.subr.mxu0 0.0
    %1813 = vmatpush1.msra.mxu0 0.0
    %1814 = vmatprep.subr.mxu0 0.0
    %1815 = vmatpush1.msra.mxu0 0.0
    %1816 = vmatprep.subr.mxu0 0.0
    %1817 = vmatpush1.msra.mxu0 0.0
    %1818 = vmatprep.subr.mxu0 0.0
    %1819 = vmatpush1.msra.mxu0 0.0
    %1820 = vmatprep.subr.mxu0 0.0
    %1821 = vmatpush1.msra.mxu0 0.0
    %1822 = vmatprep.subr.mxu0 0.0
    %1823 = vmatpush1.msra.mxu0 0.0
    %1824 = vmatprep.subr.mxu0 0.0
    %1825 = vmatpush1.msra.mxu0 0.0
    %1826 = vmatprep.subr.mxu0 0.0
    %1827 = vmatpush1.msra.mxu0 0.0
    %1828 = vmatprep.subr.mxu0 0.0
    %1829 = vmatpush1.msra.mxu0 0.0
    %1830 = vmatprep.subr.mxu0 0.0
    %1831 = vmatpush1.msra.mxu0 0.0
    %1832 = vmatprep.subr.mxu0 0.0
    %1833 = vmatpush1.msra.mxu0 0.0
    %1834 = vmatprep.subr.mxu0 0.0
    %1835 = vmatpush1.msra.mxu0 0.0
    %1836 = vmatprep.subr.mxu0 0.0
    %1837 = vmatpush1.msra.mxu0 0.0
    %1838 = vmatprep.subr.mxu0 0.0
    %1839 = vmatpush1.msra.mxu0 0.0
    %1840 = vmatprep.subr.mxu0 0.0
    %1841 = vmatpush1.msra.mxu0 0.0
    %1842 = vmatprep.subr.mxu0 0.0
    %1843 = vmatpush1.msra.mxu0 0.0
    %1844 = vmatprep.subr.mxu0 0.0
    %1845 = vmatpush1.msra.mxu0 0.0
    %1846 = vmatprep.subr.mxu0 0.0
    %1847 = vmatpush1.msra.mxu0 0.0
    %1848 = vmatprep.subr.mxu0 0.0
    %1849 = vmatpush1.msra.mxu0 0.0
    %1850 = vmatprep.subr.mxu0 0.0
    %1851 = vmatpush1.msra.mxu0 0.0
    %1852 = vmatprep.subr.mxu0 0.0
    %1853 = vmatpush1.msra.mxu0 0.0
    %1854 = vmatprep.subr.mxu0 0.0
    %1855 = vmatpush1.msra.mxu0 0.0
    %1856 = vmatprep.subr.mxu0 0.0
    %1857 = vmatpush1.msra.mxu0 0.0
    %1858 = vmatprep.subr.mxu0 0.0
    %1859 = vmatpush1.msra.mxu0 0.0
    %1860 = vmatprep.subr.mxu0 0.0
    %1861 = vmatpush1.msra.mxu0 0.0
    %1862 = vmatprep.subr.mxu0 0.0
    %1863 = vmatpush1.msra.mxu0 0.0
    %1864 = vmatprep.subr.mxu0 0.0
    %1865 = vmatpush1.msra.mxu0 0.0
    %1866 = vmatprep.mubr.f32.mxu0 0.0
    %1867 = vmatmul.mubr.f32.gmra.mrb[0].mxu0 %v1800
    %v1868 = vpop.f32.mrb[0].mxu0
    %v1869 = vadd.f32 0.0, %v1868
    %v1870 = vpop.f32.mrb[0].mxu0
    %1871 = vdwg.mxu0
    %1872 = vrot.lane.b32.xlu0 %v1348, 64
    %v1873 = vpop.permute.xlu0 %1872
    %v1876 = vsel %vm600, %v1717, 0
    %1878 = vmatprep.subr.mxu0 0.0
    %1879 = vmatpush1.msra.mxu0 %v1873
    %1880 = vmatprep.subr.mxu0 0.0
    %1881 = vmatpush1.msra.mxu0 0.0
    %1882 = vmatprep.subr.mxu0 0.0
    %1883 = vmatpush1.msra.mxu0 0.0
    %1884 = vmatprep.subr.mxu0 0.0
    %1885 = vmatpush1.msra.mxu0 0.0
    %1886 = vmatprep.subr.mxu0 0.0
    %1887 = vmatpush1.msra.mxu0 0.0
    %1888 = vmatprep.subr.mxu0 0.0
    %1889 = vmatpush1.msra.mxu0 0.0
    %1890 = vmatprep.subr.mxu0 0.0
    %1891 = vmatpush1.msra.mxu0 0.0
    %1892 = vmatprep.subr.mxu0 0.0
    %1893 = vmatpush1.msra.mxu0 0.0
    %1894 = vmatprep.subr.mxu0 0.0
    %1895 = vmatpush1.msra.mxu0 0.0
    %1896 = vmatprep.subr.mxu0 0.0
    %1897 = vmatpush1.msra.mxu0 0.0
    %1898 = vmatprep.subr.mxu0 0.0
    %1899 = vmatpush1.msra.mxu0 0.0
    %1900 = vmatprep.subr.mxu0 0.0
    %1901 = vmatpush1.msra.mxu0 0.0
    %1902 = vmatprep.subr.mxu0 0.0
    %1903 = vmatpush1.msra.mxu0 0.0
    %1904 = vmatprep.subr.mxu0 0.0
    %1905 = vmatpush1.msra.mxu0 0.0
    %1906 = vmatprep.subr.mxu0 0.0
    %1907 = vmatpush1.msra.mxu0 0.0
    %1908 = vmatprep.subr.mxu0 0.0
    %1909 = vmatpush1.msra.mxu0 0.0
    %1910 = vmatprep.subr.mxu0 0.0
    %1911 = vmatpush1.msra.mxu0 0.0
    %1912 = vmatprep.subr.mxu0 0.0
    %1913 = vmatpush1.msra.mxu0 0.0
    %1914 = vmatprep.subr.mxu0 0.0
    %1915 = vmatpush1.msra.mxu0 0.0
    %1916 = vmatprep.subr.mxu0 0.0
    %1917 = vmatpush1.msra.mxu0 0.0
    %1918 = vmatprep.subr.mxu0 0.0
    %1919 = vmatpush1.msra.mxu0 0.0
    %1920 = vmatprep.subr.mxu0 0.0
    %1921 = vmatpush1.msra.mxu0 0.0
    %1922 = vmatprep.subr.mxu0 0.0
    %1923 = vmatpush1.msra.mxu0 0.0
    %1924 = vmatprep.subr.mxu0 0.0
    %1925 = vmatpush1.msra.mxu0 0.0
    %1926 = vmatprep.subr.mxu0 0.0
    %1927 = vmatpush1.msra.mxu0 0.0
    %1928 = vmatprep.subr.mxu0 0.0
    %1929 = vmatpush1.msra.mxu0 0.0
    %1930 = vmatprep.subr.mxu0 0.0
    %1931 = vmatpush1.msra.mxu0 0.0
    %1932 = vmatprep.subr.mxu0 0.0
    %1933 = vmatpush1.msra.mxu0 0.0
    %1934 = vmatprep.subr.mxu0 0.0
    %1935 = vmatpush1.msra.mxu0 0.0
    %1936 = vmatprep.subr.mxu0 0.0
    %1937 = vmatpush1.msra.mxu0 0.0
    %1938 = vmatprep.subr.mxu0 0.0
    %1939 = vmatpush1.msra.mxu0 0.0
    %1940 = vmatprep.subr.mxu0 0.0
    %1941 = vmatpush1.msra.mxu0 0.0
    %1942 = vmatprep.mubr.f32.mxu0 0.0
    %1943 = vmatmul.mubr.f32.gmra.mrb[0].mxu0 %v1876
    %v1944 = vpop.f32.mrb[0].mxu0
    %v1945 = vadd.f32 0.0, %v1944
    %v1946 = vpop.f32.mrb[0].mxu0
    %1947 = vdwg.mxu0
    %1948 = vrot.lane.b32.xlu0 %v1350, 64
    %v1949 = vpop.permute.xlu0 %1948
    %v1952 = vsel %vm600, %v1719, 0
    %1954 = vmatprep.subr.mxu0 0.0
    %1955 = vmatpush1.msra.mxu0 %v1949
    %1956 = vmatprep.subr.mxu0 0.0
    %1957 = vmatpush1.msra.mxu0 0.0
    %1958 = vmatprep.subr.mxu0 0.0
    %1959 = vmatpush1.msra.mxu0 0.0
    %1960 = vmatprep.subr.mxu0 0.0
    %1961 = vmatpush1.msra.mxu0 0.0
    %1962 = vmatprep.subr.mxu0 0.0
    %1963 = vmatpush1.msra.mxu0 0.0
    %1964 = vmatprep.subr.mxu0 0.0
    %1965 = vmatpush1.msra.mxu0 0.0
    %1966 = vmatprep.subr.mxu0 0.0
    %1967 = vmatpush1.msra.mxu0 0.0
    %1968 = vmatprep.subr.mxu0 0.0
    %1969 = vmatpush1.msra.mxu0 0.0
    %1970 = vmatprep.subr.mxu0 0.0
    %1971 = vmatpush1.msra.mxu0 0.0
    %1972 = vmatprep.subr.mxu0 0.0
    %1973 = vmatpush1.msra.mxu0 0.0
    %1974 = vmatprep.subr.mxu0 0.0
    %1975 = vmatpush1.msra.mxu0 0.0
    %1976 = vmatprep.subr.mxu0 0.0
    %1977 = vmatpush1.msra.mxu0 0.0
    %1978 = vmatprep.subr.mxu0 0.0
    %1979 = vmatpush1.msra.mxu0 0.0
    %1980 = vmatprep.subr.mxu0 0.0
    %1981 = vmatpush1.msra.mxu0 0.0
    %1982 = vmatprep.subr.mxu0 0.0
    %1983 = vmatpush1.msra.mxu0 0.0
    %1984 = vmatprep.subr.mxu0 0.0
    %1985 = vmatpush1.msra.mxu0 0.0
    %1986 = vmatprep.subr.mxu0 0.0
    %1987 = vmatpush1.msra.mxu0 0.0
    %1988 = vmatprep.subr.mxu0 0.0
    %1989 = vmatpush1.msra.mxu0 0.0
    %1990 = vmatprep.subr.mxu0 0.0
    %1991 = vmatpush1.msra.mxu0 0.0
    %1992 = vmatprep.subr.mxu0 0.0
    %1993 = vmatpush1.msra.mxu0 0.0
    %1994 = vmatprep.subr.mxu0 0.0
    %1995 = vmatpush1.msra.mxu0 0.0
    %1996 = vmatprep.subr.mxu0 0.0
    %1997 = vmatpush1.msra.mxu0 0.0
    %1998 = vmatprep.subr.mxu0 0.0
    %1999 = vmatpush1.msra.mxu0 0.0
    %2000 = vmatprep.subr.mxu0 0.0
    %2001 = vmatpush1.msra.mxu0 0.0
    %2002 = vmatprep.subr.mxu0 0.0
    %2003 = vmatpush1.msra.mxu0 0.0
    %2004 = vmatprep.subr.mxu0 0.0
    %2005 = vmatpush1.msra.mxu0 0.0
    %2006 = vmatprep.subr.mxu0 0.0
    %2007 = vmatpush1.msra.mxu0 0.0
    %2008 = vmatprep.subr.mxu0 0.0
    %2009 = vmatpush1.msra.mxu0 0.0
    %2010 = vmatprep.subr.mxu0 0.0
    %2011 = vmatpush1.msra.mxu0 0.0
    %2012 = vmatprep.subr.mxu0 0.0
    %2013 = vmatpush1.msra.mxu0 0.0
    %2014 = vmatprep.subr.mxu0 0.0
    %2015 = vmatpush1.msra.mxu0 0.0
    %2016 = vmatprep.subr.mxu0 0.0
    %2017 = vmatpush1.msra.mxu0 0.0
    %2018 = vmatprep.mubr.f32.mxu0 0.0
    %2019 = vmatmul.mubr.f32.gmra.mrb[0].mxu0 %v1952
    %v2020 = vpop.f32.mrb[0].mxu0
    %v2021 = vadd.f32 0.0, %v2020
    %v2022 = vpop.f32.mrb[0].mxu0
    %2023 = vdwg.mxu0
    %2026 = vrot.lane.b32.xlu0 %v1945, 16
    %v2027 = vpop.permute.xlu0 %2026
    %2028 = vrot.lane.b32.xlu0 %v2021, 16
    %v2029 = vpop.permute.xlu0 %2028
    %v2032 = vsel %vm277, %v1793, %v2027
    %v2033 = vsel %vm277, %v1869, %v2029
    %v2034 = vadd.f32 %v2032, %v1249
    %v2035 = vadd.f32 %v2033, %v1250
    %s2036 = scalar_lea.vmem %s5, 1
    %v2037 = vld [vmem:[%s2036] sm:$0x1]
    %s2038 = scalar_lea.vmem %s6, 1
    %v2039 = vld [vmem:[%s2038] sm:$0x1]
    %v2040 = vsel %vm187, %v2034, 0.0
    %2041 = vadd.xlane.f32.xlu0 %v2040
    %v2042 = vpop.xlane.xlu0 %2041
    %v2043 = vsel %vm187, %v2035, 0.0
    %2044 = vadd.xlane.f32.xlu0 %v2043
    %v2045 = vpop.xlane.xlu0 %2044
    %v2046 = vmul.f32 %v2042, %v982
    %v2047 = vmul.f32 %v2045, %v982
    %v2048 = vsub.f32 %v2034, %v2046
    %v2049 = vsub.f32 %v2035, %v2047
    %v2050 = vmul.f32 %v2048, %v2048
    %v2051 = vmul.f32 %v2049, %v2049
    %v2052 = vsel %vm187, %v2050, 0.0
    %2053 = vadd.xlane.f32.xlu0 %v2052
    %v2054 = vpop.xlane.xlu0 %2053
    %v2055 = vsel %vm187, %v2051, 0.0
    %2056 = vadd.xlane.f32.xlu0 %v2055
    %v2057 = vpop.xlane.xlu0 %2056
    %v2058 = vmul.f32 %v2054, %v982
    %v2059 = vmul.f32 %v2057, %v982
    %v2060 = vadd.f32 %v2058, 1e-05
    %v2061 = vadd.f32 %v2059, 1e-05
    %v2062 = vrsqrt.pop %v2060
    %v2063 = vrsqrt.pop %v2061
    %v2064 = vmul.f32 %v2048, %v2062
    %v2065 = vmul.f32 %v2049, %v2063
    %v2067 = vlaneseq
    %v2068 = vshrl.u32 %v2067, 7
    %v2069 = vsub.s32 0, %v2068
    %v2070 = vrot.slane %v2037, %v2069
    %v2072 = vmul.f32 %v2064, %v2070
    %v2073 = vmul.f32 %v2065, %v2070
    %v2075 = vlaneseq
    %v2076 = vshrl.u32 %v2075, 7
    %v2077 = vsub.s32 0, %v2076
    %v2078 = vrot.slane %v2039, %v2077
    %v2080 = vadd.f32 %v2072, %v2078
    %v2081 = vadd.f32 %v2073, %v2078
    %s2082 = scalar_lea.vmem [#allocation8], 32
    %v2083 = vld [vmem:[%s2082] sm:$0xff]
    %v2084 = vld [vmem:[%s2082 + $0x8] sm:$0xff]
    %v2085 = vld [vmem:[%s2082 + $0x10] sm:$0xff]
    %v2086 = vld [vmem:[%s2082 + $0x18] sm:$0xff]
    %s2087 = scalar_lea.vmem %s8, 1
    %v2088 = vld [vmem:[%s2087] sm:$0x1]
    %v2090 = vlaneseq
    %v2091 = vshrl.u32 %v2090, 7
    %v2092 = vsub.s32 0, %v2091
    %v2093 = vrot.slane %v2088, %v2092
    %v2096 = vsel %vm187, %v2080, 0
    %v2099 = vsel %vm187, %v2081, 0
    %2101 = vmatprep.subr.mxu0 0.0
    %2102 = vmatpush1.msra.mxu0 %v2083
    %2103 = vmatprep.subr.mxu0 0.0
    %2104 = vmatpush1.msra.mxu0 %v2084
    %2105 = vmatprep.subr.mxu0 0.0
    %2106 = vmatpush1.msra.mxu0 %v2085
    %2107 = vmatprep.subr.mxu0 0.0
    %2108 = vmatpush1.msra.mxu0 %v2086
    %2109 = vmatprep.subr.mxu0 0.0
    %2110 = vmatpush1.msra.mxu0 0.0
    %2111 = vmatprep.subr.mxu0 0.0
    %2112 = vmatpush1.msra.mxu0 0.0
    %2113 = vmatprep.subr.mxu0 0.0
    %2114 = vmatpush1.msra.mxu0 0.0
    %2115 = vmatprep.subr.mxu0 0.0
    %2116 = vmatpush1.msra.mxu0 0.0
    %2117 = vmatprep.subr.mxu0 0.0
    %2118 = vmatpush1.msra.mxu0 0.0
    %2119 = vmatprep.subr.mxu0 0.0
    %2120 = vmatpush1.msra.mxu0 0.0
    %2121 = vmatprep.subr.mxu0 0.0
    %2122 = vmatpush1.msra.mxu0 0.0
    %2123 = vmatprep.subr.mxu0 0.0
    %2124 = vmatpush1.msra.mxu0 0.0
    %2125 = vmatprep.subr.mxu0 0.0
    %2126 = vmatpush1.msra.mxu0 0.0
    %2127 = vmatprep.subr.mxu0 0.0
    %2128 = vmatpush1.msra.mxu0 0.0
    %2129 = vmatprep.subr.mxu0 0.0
    %2130 = vmatpush1.msra.mxu0 0.0
    %2131 = vmatprep.subr.mxu0 0.0
    %2132 = vmatpush1.msra.mxu0 0.0
    %2133 = vmatprep.subr.mxu0 0.0
    %2134 = vmatpush1.msra.mxu0 0.0
    %2135 = vmatprep.subr.mxu0 0.0
    %2136 = vmatpush1.msra.mxu0 0.0
    %2137 = vmatprep.subr.mxu0 0.0
    %2138 = vmatpush1.msra.mxu0 0.0
    %2139 = vmatprep.subr.mxu0 0.0
    %2140 = vmatpush1.msra.mxu0 0.0
    %2141 = vmatprep.subr.mxu0 0.0
    %2142 = vmatpush1.msra.mxu0 0.0
    %2143 = vmatprep.subr.mxu0 0.0
    %2144 = vmatpush1.msra.mxu0 0.0
    %2145 = vmatprep.subr.mxu0 0.0
    %2146 = vmatpush1.msra.mxu0 0.0
    %2147 = vmatprep.subr.mxu0 0.0
    %2148 = vmatpush1.msra.mxu0 0.0
    %2149 = vmatprep.subr.mxu0 0.0
    %2150 = vmatpush1.msra.mxu0 0.0
    %2151 = vmatprep.subr.mxu0 0.0
    %2152 = vmatpush1.msra.mxu0 0.0
    %2153 = vmatprep.subr.mxu0 0.0
    %2154 = vmatpush1.msra.mxu0 0.0
    %2155 = vmatprep.subr.mxu0 0.0
    %2156 = vmatpush1.msra.mxu0 0.0
    %2157 = vmatprep.subr.mxu0 0.0
    %2158 = vmatpush1.msra.mxu0 0.0
    %2159 = vmatprep.subr.mxu0 0.0
    %2160 = vmatpush1.msra.mxu0 0.0
    %2161 = vmatprep.subr.mxu0 0.0
    %2162 = vmatpush1.msra.mxu0 0.0
    %2163 = vmatprep.subr.mxu0 0.0
    %2164 = vmatpush1.msra.mxu0 0.0
    %2165 = vmatprep.mubr.f32.mxu0 0.0
    %2166 = vmatmul.mubr.f32.gmra.mrb[0].mxu0 %v2096
    %v2167 = vpop.f32.mrb[0].mxu0
    %v2168 = vadd.f32 %v2093, %v2167
    %v2169 = vpop.f32.mrb[0].mxu0
    %2170 = vmatprep.mubr.f32.mxu0 0.0
    %2171 = vmatmul.mubr.f32.gmra.mrb[0].mxu0 %v2099
    %v2172 = vpop.f32.mrb[0].mxu0
    %v2173 = vadd.f32 %v2093, %v2172
    %v2174 = vpop.f32.mrb[0].mxu0
    %2175 = vdwg.mxu0
    %v2176 = vmax.f32 %v2168, 0.0
    %v2177 = vmax.f32 %v2173, 0.0
    %s2178 = scalar_lea.vmem [#allocation10], 32
    %v2179 = vld [vmem:[%s2178] sm:$0xff]
    %v2180 = vld [vmem:[%s2178 + $0x8] sm:$0xff]
    %v2181 = vld [vmem:[%s2178 + $0x10] sm:$0xff]
    %v2182 = vld [vmem:[%s2178 + $0x18] sm:$0xff]
    %s2183 = scalar_lea.vmem %s10, 1
    %v2184 = vld [vmem:[%s2183] sm:$0x1]
    %v2186 = vlaneseq
    %v2187 = vshrl.u32 %v2186, 7
    %v2188 = vsub.s32 0, %v2187
    %v2189 = vrot.slane %v2184, %v2188
    %v2192 = vsel %vm187, %v2176, 0
    %v2195 = vsel %vm187, %v2177, 0
    %2197 = vmatprep.subr.mxu0 0.0
    %2198 = vmatpush1.msra.mxu0 %v2179
    %2199 = vmatprep.subr.mxu0 0.0
    %2200 = vmatpush1.msra.mxu0 %v2180
    %2201 = vmatprep.subr.mxu0 0.0
    %2202 = vmatpush1.msra.mxu0 %v2181
    %2203 = vmatprep.subr.mxu0 0.0
    %2204 = vmatpush1.msra.mxu0 %v2182
    %2205 = vmatprep.subr.mxu0 0.0
    %2206 = vmatpush1.msra.mxu0 0.0
    %2207 = vmatprep.subr.mxu0 0.0
    %2208 = vmatpush1.msra.mxu0 0.0
    %2209 = vmatprep.subr.mxu0 0.0
    %2210 = vmatpush1.msra.mxu0 0.0
    %2211 = vmatprep.subr.mxu0 0.0
    %2212 = vmatpush1.msra.mxu0 0.0
    %2213 = vmatprep.subr.mxu0 0.0
    %2214 = vmatpush1.msra.mxu0 0.0
    %2215 = vmatprep.subr.mxu0 0.0
    %2216 = vmatpush1.msra.mxu0 0.0
    %2217 = vmatprep.subr.mxu0 0.0
    %2218 = vmatpush1.msra.mxu0 0.0
    %2219 = vmatprep.subr.mxu0 0.0
    %2220 = vmatpush1.msra.mxu0 0.0
    %2221 = vmatprep.subr.mxu0 0.0
    %2222 = vmatpush1.msra.mxu0 0.0
    %2223 = vmatprep.subr.mxu0 0.0
    %2224 = vmatpush1.msra.mxu0 0.0
    %2225 = vmatprep.subr.mxu0 0.0
    %2226 = vmatpush1.msra.mxu0 0.0
    %2227 = vmatprep.subr.mxu0 0.0
    %2228 = vmatpush1.msra.mxu0 0.0
    %2229 = vmatprep.subr.mxu0 0.0
    %2230 = vmatpush1.msra.mxu0 0.0
    %2231 = vmatprep.subr.mxu0 0.0
    %2232 = vmatpush1.msra.mxu0 0.0
    %2233 = vmatprep.subr.mxu0 0.0
    %2234 = vmatpush1.msra.mxu0 0.0
    %2235 = vmatprep.subr.mxu0 0.0
    %2236 = vmatpush1.msra.mxu0 0.0
    %2237 = vmatprep.subr.mxu0 0.0
    %2238 = vmatpush1.msra.mxu0 0.0
    %2239 = vmatprep.subr.mxu0 0.0
    %2240 = vmatpush1.msra.mxu0 0.0
    %2241 = vmatprep.subr.mxu0 0.0
    %2242 = vmatpush1.msra.mxu0 0.0
    %2243 = vmatprep.subr.mxu0 0.0
    %2244 = vmatpush1.msra.mxu0 0.0
    %2245 = vmatprep.subr.mxu0 0.0
    %2246 = vmatpush1.msra.mxu0 0.0
    %2247 = vmatprep.subr.mxu0 0.0
    %2248 = vmatpush1.msra.mxu0 0.0
    %2249 = vmatprep.subr.mxu0 0.0
    %2250 = vmatpush1.msra.mxu0 0.0
    %2251 = vmatprep.subr.mxu0 0.0
    %2252 = vmatpush1.msra.mxu0 0.0
    %2253 = vmatprep.subr.mxu0 0.0
    %2254 = vmatpush1.msra.mxu0 0.0
    %2255 = vmatprep.subr.mxu0 0.0
    %2256 = vmatpush1.msra.mxu0 0.0
    %2257 = vmatprep.subr.mxu0 0.0
    %2258 = vmatpush1.msra.mxu0 0.0
    %2259 = vmatprep.subr.mxu0 0.0
    %2260 = vmatpush1.msra.mxu0 0.0
    %2261 = vmatprep.mubr.f32.mxu0 0.0
    %2262 = vmatmul.mubr.f32.gmra.mrb[0].mxu0 %v2192
    %v2263 = vpop.f32.mrb[0].mxu0
    %v2264 = vadd.f32 %v2189, %v2263
    %v2265 = vpop.f32.mrb[0].mxu0
    %2266 = vmatprep.mubr.f32.mxu0 0.0
    %2267 = vmatmul.mubr.f32.gmra.mrb[0].mxu0 %v2195
    %v2268 = vpop.f32.mrb[0].mxu0
    %v2269 = vadd.f32 %v2189, %v2268
    %v2270 = vpop.f32.mrb[0].mxu0
    %2271 = vdwg.mxu0
    %v2272 = vadd.f32 %v2264, %v2080
    %v2273 = vadd.f32 %v2269, %v2081
    %s2274 = scalar_lea.vmem %s11, 1
    %v2275 = vld [vmem:[%s2274] sm:$0x1]
    %s2276 = scalar_lea.vmem %s12, 1
    %v2277 = vld [vmem:[%s2276] sm:$0x1]
    %v2278 = vsel %vm187, %v2272, 0.0
    %2279 = vadd.xlane.f32.xlu0 %v2278
    %v2280 = vpop.xlane.xlu0 %2279
    %v2281 = vsel %vm187, %v2273, 0.0
    %2282 = vadd.xlane.f32.xlu0 %v2281
    %v2283 = vpop.xlane.xlu0 %2282
    %v2284 = vmul.f32 %v2280, %v982
    %v2285 = vmul.f32 %v2283, %v982
    %v2286 = vsub.f32 %v2272, %v2284
    %v2287 = vsub.f32 %v2273, %v2285
    %v2288 = vmul.f32 %v2286, %v2286
    %v2289 = vmul.f32 %v2287, %v2287
    %v2290 = vsel %vm187, %v2288, 0.0
    %2291 = vadd.xlane.f32.xlu0 %v2290
    %v2292 = vpop.xlane.xlu0 %2291
    %v2293 = vsel %vm187, %v2289, 0.0
    %2294 = vadd.xlane.f32.xlu0 %v2293
    %v2295 = vpop.xlane.xlu0 %2294
    %v2296 = vmul.f32 %v2292, %v982
    %v2297 = vmul.f32 %v2295, %v982
    %v2298 = vadd.f32 %v2296, 1e-05
    %v2299 = vadd.f32 %v2297, 1e-05
    %v2300 = vrsqrt.pop %v2298
    %v2301 = vrsqrt.pop %v2299
    %v2302 = vmul.f32 %v2286, %v2300
    %v2303 = vmul.f32 %v2287, %v2301
    %v2305 = vlaneseq
    %v2306 = vshrl.u32 %v2305, 7
    %v2307 = vsub.s32 0, %v2306
    %v2308 = vrot.slane %v2275, %v2307
    %v2310 = vmul.f32 %v2302, %v2308
    %v2311 = vmul.f32 %v2303, %v2308
    %v2313 = vlaneseq
    %v2314 = vshrl.u32 %v2313, 7
    %v2315 = vsub.s32 0, %v2314
    %v2316 = vrot.slane %v2277, %v2315
    %v2318 = vadd.f32 %v2310, %v2316
    %v2319 = vadd.f32 %v2311, %v2316
    %v2320 = vmul.f32 %v2318, %v133
    %v2321 = vmul.f32 %v2319, %v140
    %v2322 = vsub.s32 %v113, 1
    %2323 = vset.pattern.permute.xlu0 0
    %2324 = vperm.xlu0 %2323, %v2322
    %v2325 = vpop.permute.xlu0 %2324
    %vm2326 = vcmp.eq.s32.totalorder %v115, %v2325
    %v2327 = vsel %vm2326, 1, 0
    %v2328 = vcvt.s32.f32 %v2327
    %v2329 = vlaneseq
    %v2330 = vshrl.u32 %v2329, 7
    %v2331 = vsub.s32 0, %v2330
    %v2332 = vrot.slane %v2328, %v2331
    %2334 = vbcast.lane.b32.xlu0 %v2332, 256
    %v2335 = vpop.permute.xlu0 %2334
    %v2336 = vlaneseq
    %v2337 = vshrl.u32 %v2336, 7
    %v2338 = vsub.s32 1, %v2337
    %v2339 = vrot.slane %v2328, %v2338
    %2341 = vbcast.lane.b32.xlu0 %v2339, 256
    %v2342 = vpop.permute.xlu0 %2341
    %v2343 = vmul.f32 %v2320, %v2335
    %v2344 = vmul.f32 %v2321, %v2342
    %v2345 = vsel %vm187, %v2343, 0.0
    %v2346 = vrot.slane %v2345, 4
    %v2347 = vadd.f32 %v2345, %v2346
    %v2348 = vrot.slane %v2347, 2
    %v2349 = vadd.f32 %v2347, %v2348
    %v2350 = vrot.slane %v2349, 1
    %v2351 = vadd.f32 %v2349, %v2350
    %v2352 = vsel %vm187, %v2344, 0.0
    %v2353 = vrot.slane %v2352, 4
    %v2354 = vadd.f32 %v2352, %v2353
    %v2355 = vrot.slane %v2354, 2
    %v2356 = vadd.f32 %v2354, %v2355
    %v2357 = vrot.slane %v2356, 1
    %v2358 = vadd.f32 %v2356, %v2357
    %vm2361 = vcmask 1041409
    %v2362 = vsel %vm2361, %v2358, %v2351
    %vm2364 = vcmask 254976
    %2365 = vst.msk [vmem:[#allocation11] sm:$0x3] %vm2364, %v2362
    // Predicated region
    $region74: #{tpu_custom_call.1} parent=1 // pred_check
      _
    $region75: #{tpu_custom_call.1} parent=1 // pred_check_branch
      %2367 = sbr.rel (0) target = $region77
    $region76: #{tpu_custom_call.1} parent=1 // pred_region
      %s2369 = ssub.s32 32, 32
      %2370 = vsyncadd [#allocation4], %s2369
      %s2372 = sshll.u32 [#allocation11], 4
      %s2373 = int_to_ptr.vmem [resolvable:$true] %s2372
      %2375 = dma.vmem_to_hbm [thread:$0]  %s2373, 32, %s13, [#allocation4]
    $region77: #{tpu_custom_call.1} parent=1 // pred_fallthru
      _
    // Predicated region
    $region78: #{tpu_custom_call.1} parent=1 // pred_check
      _
    $region79: #{tpu_custom_call.1} parent=1 // pred_check_branch
      %2377 = sbr.rel (0) target = $region81
    $region80: #{tpu_custom_call.1} parent=1 // pred_region
      %2378 = dma.done [#allocation4], 32
    $region81: #{tpu_custom_call.1} parent=1 // pred_fallthru
      _
    %2379 = vsyncpa [#allocation3], 1
    %2380 = vsyncpa [#allocation6], 1
    %2381 = vsyncpa [#allocation9], 1
    %2382 = vsyncpa [#allocation4], 1

</llo_original>
